<compile_context>
chip_gen: v7x
topology: tpu7x:2x2x1
jax: 0.10.0
libtpu: 0.0.40
codegen_flags: <defaults>
</compile_context>

<pallas_src>
import math

import jax
import jax.numpy as jnp
from jax.experimental import pallas as pl
from jax.experimental.pallas import tpu as pltpu

_LOG_2PI = math.log(2.0 * math.pi)


def _nll_gaussian2d_kernel(gt_x_ref, gt_y_ref, valid_ref,
                           px_ref, py_ref, sxx_ref, syy_ref, conf_ref,
                           logl_ref):
    n_modes = px_ref.shape[1]
    n_t = px_ref.shape[2]

    # Hoisted once per grid step, reused by every mode.
    gt_x = gt_x_ref[...]              # (TB, T)
    gt_y = gt_y_ref[...]              # (TB, T)
    valid = valid_ref[...]            # (TB, T)

    conf_cols = [conf_ref[:, m, :] for m in range(n_modes)]   # M x (TB, 1)

    # log_softmax over modes, expressed as elementwise ops on (TB, 1) tiles.
    c_max = conf_cols[0]
    for m in range(1, n_modes):
        c_max = jnp.maximum(c_max, conf_cols[m])
    c_sum = jnp.exp(conf_cols[0] - c_max)
    for m in range(1, n_modes):
        c_sum = c_sum + jnp.exp(conf_cols[m] - c_max)
    conf_lse = c_max + jnp.log(c_sum)                          # (TB, 1)

    # Per-mode  sum_t log N  +  log_softmax(conf),  on dense (TB, T) tiles.
    scores = []
    for m in range(n_modes):                                   # M is small & static
        dx = (px_ref[:, m, :] - gt_x) * valid
        dy = (py_ref[:, m, :] - gt_y) * valid
        sxx = sxx_ref[:, m, :]
        syy = syy_ref[:, m, :]
        prod = sxx * syy
        # dx^2/sxx + dy^2/syy == (dx^2*syy + dy^2*sxx) / (sxx*syy): one divide.
        quad = (dx * dx * syy + dy * dy * sxx) / prod
        acc = jnp.sum(jnp.log(prod) + quad, axis=-1, keepdims=True)    # (TB, 1)
        log_n_sum = -0.5 * (acc + n_t * _LOG_2PI)
        scores.append(log_n_sum + (conf_cols[m] - conf_lse))

    # logsumexp over modes (numerically stable), elementwise on (TB, 1) tiles.
    s_max = scores[0]
    for m in range(1, n_modes):
        s_max = jnp.maximum(s_max, scores[m])
    s_sum = jnp.exp(scores[0] - s_max)
    for m in range(1, n_modes):
        s_sum = s_sum + jnp.exp(scores[m] - s_max)

    logl_ref[...] = s_max + jnp.log(s_sum)                     # (TB, 1)


def _choose_block_b(batch, n_modes, n_t, target_block_bytes=2 * 1024 * 1024):
    """Batch rows per grid step: big enough to amortise per-step cost, small
    enough that the double-buffered tiles stay well under the v7x VMEM budget."""
    row_bytes = 4 * (4 * n_modes * n_t + 3 * n_t + n_modes + 1)
    tb = max(8, target_block_bytes // row_bytes)
    tb = int(min(tb, 1024, batch))
    if batch < 8:
        return batch
    return max(8, (tb // 8) * 8)


def nll_gaussian_2d(future_local, future_valid, xy, sigma_xx, sigma_yy,
                    confidences, *, block_b=None):
    """JAX/Pallas equivalent of NLLGaussian2d.forward(data_dict, prediction_dict).

    future_local : (B, T, 2)    ground-truth future positions
    future_valid : (B, T)       validity mask
    xy           : (B, M, T, 2) predicted positions per mode
    sigma_xx     : (B, M, T, 1) diagonal variances
    sigma_yy     : (B, M, T, 1)
    confidences  : (B, M)       mode logits
    """
    B, M, T, _ = xy.shape
    f32 = jnp.float32

    # x/y split of the prediction tensor: one fused XLA pass over `xy`
    # (read once, write px/py). Everything else below is a free reshape.
    px = xy[..., 0].astype(f32)                       # (B, M, T)
    py = xy[..., 1].astype(f32)                       # (B, M, T)
    sxx = sigma_xx[..., 0].astype(f32)                # (B, M, T)  drop size-1 dim
    syy = sigma_yy[..., 0].astype(f32)                # (B, M, T)
    gt_x = future_local[..., 0].astype(f32)           # (B, T)     tiny
    gt_y = future_local[..., 1].astype(f32)           # (B, T)
    valid = future_valid.astype(f32)                  # (B, T)
    conf = confidences.astype(f32).reshape(B, M, 1)   # (B, M, 1)

    tb = block_b if block_b is not None else _choose_block_b(B, M, T)
    grid = (pl.cdiv(B, tb),)

    spec_bmt = pl.BlockSpec((tb, M, T), lambda b: (b, 0, 0))
    spec_bt = pl.BlockSpec((tb, T), lambda b: (b, 0))

    logl = pl.pallas_call(
        _nll_gaussian2d_kernel,
        out_shape=jax.ShapeDtypeStruct((B, 1), f32),
        grid=grid,
        in_specs=[
            spec_bt,                                          # gt_x
            spec_bt,                                          # gt_y
            spec_bt,                                          # valid
            spec_bmt,                                         # pred x
            spec_bmt,                                         # pred y
            spec_bmt,                                         # sigma_xx
            spec_bmt,                                         # sigma_yy
            pl.BlockSpec((tb, M, 1), lambda b: (b, 0, 0)),    # confidences
        ],
        out_specs=pl.BlockSpec((tb, 1), lambda b: (b, 0)),
        compiler_params=pltpu.CompilerParams(
            dimension_semantics=("parallel",),
            vmem_limit_bytes=32 * 1024 * 1024,
        ),
    )(gt_x, gt_y, valid, px, py, sxx, syy, conf)

    # final `-log_L.mean()` is trivial glue over B scalars
    return -jnp.mean(logl)


def _reference_loss(future_local, future_valid, xy, sigma_xx, sigma_yy,
                    confidences):
    """Plain-JAX reference mirroring the PyTorch forward exactly."""
    gt = future_local[:, None]                                   # (B,1,T,2)
    diff = (xy - gt) * future_valid[:, None, :, None]
    sxx = sigma_xx[..., 0]
    syy = sigma_yy[..., 0]
    bilinear = diff[..., 0] ** 2 / sxx + diff[..., 1] ** 2 / syy
    log_n = -0.5 * _LOG_2PI - 0.5 * jnp.log(sxx * syy) - 0.5 * bilinear
    log_conf = jax.nn.log_softmax(confidences, axis=-1)
    log_l = jax.nn.logsumexp(log_n.sum(axis=2) + log_conf, axis=1)
    return -log_l.mean()


if __name__ == "__main__":
    key = jax.random.PRNGKey(0)
    B, M, T = 16, 4, 16   # batch, modes, future timestamps (small demo shapes)
    ks = jax.random.split(key, 6)

    future_local = jax.random.normal(ks[0], (B, T, 2), jnp.float32)
    future_valid = (jax.random.uniform(ks[1], (B, T)) > 0.2).astype(jnp.float32)
    xy = jax.random.normal(ks[2], (B, M, T, 2), jnp.float32)
    sigma_xx = jax.random.uniform(ks[3], (B, M, T, 1),
                                  minval=0.5, maxval=2.0, dtype=jnp.float32)
    sigma_yy = jax.random.uniform(ks[4], (B, M, T, 1),
                                  minval=0.5, maxval=2.0, dtype=jnp.float32)
    confidences = jax.random.normal(ks[5], (B, M), jnp.float32)

    # block_b=8 -> a 2-step batch-blocked grid, exercising the pipeline.
    loss = nll_gaussian_2d(future_local, future_valid, xy,
                           sigma_xx, sigma_yy, confidences, block_b=8)
    loss = jax.block_until_ready(loss)

    ref = _reference_loss(future_local, future_valid, xy,
                          sigma_xx, sigma_yy, confidences)
    assert jnp.isfinite(loss)
    assert jnp.allclose(loss, ref, rtol=1e-5, atol=1e-5), (loss, ref)

    print("KERNEL_OK")
</pallas_src>

<mosaic_0001>
module attributes {stable_mosaic.version = 11 : i64} {
  func.func @_nll_gaussian2d_kernel(%arg0: i32, %arg1: memref<8x16xf32, #tpu.memory_space<vmem>>, %arg2: memref<8x16xf32, #tpu.memory_space<vmem>>, %arg3: memref<8x16xf32, #tpu.memory_space<vmem>>, %arg4: memref<8x4x16xf32, #tpu.memory_space<vmem>>, %arg5: memref<8x4x16xf32, #tpu.memory_space<vmem>>, %arg6: memref<8x4x16xf32, #tpu.memory_space<vmem>>, %arg7: memref<8x4x16xf32, #tpu.memory_space<vmem>>, %arg8: memref<8x4x1xf32, #tpu.memory_space<vmem>>, %arg9: memref<8x1xf32, #tpu.memory_space<vmem>>) attributes {dimension_semantics = [#tpu.dimension_semantics<parallel>], iteration_bounds = array<i64: 2>, scalar_prefetch = 0 : i64, scratch_operands = 0 : i64, tpu.core_type = #tpu.core_type<tc>, window_params = [{transform_indices = @transform_0, window_bounds = array<i64: 8, 16>}, {transform_indices = @transform_1, window_bounds = array<i64: 8, 16>}, {transform_indices = @transform_2, window_bounds = array<i64: 8, 16>}, {transform_indices = @transform_3, window_bounds = array<i64: 8, 4, 16>}, {transform_indices = @transform_4, window_bounds = array<i64: 8, 4, 16>}, {transform_indices = @transform_5, window_bounds = array<i64: 8, 4, 16>}, {transform_indices = @transform_6, window_bounds = array<i64: 8, 4, 16>}, {transform_indices = @transform_7, window_bounds = array<i64: 8, 4, 1>}, {transform_indices = @transform_8, window_bounds = array<i64: 8, 1>}]} {
    %c0 = arith.constant 0 : index
    %c0_0 = arith.constant 0 : index
    %0 = vector.load %arg1[%c0, %c0_0] : memref<8x16xf32, #tpu.memory_space<vmem>>, vector<8x16xf32>
    %c0_1 = arith.constant 0 : index
    %c0_2 = arith.constant 0 : index
    %1 = vector.load %arg2[%c0_1, %c0_2] : memref<8x16xf32, #tpu.memory_space<vmem>>, vector<8x16xf32>
    %c0_3 = arith.constant 0 : index
    %c0_4 = arith.constant 0 : index
    %2 = vector.load %arg3[%c0_3, %c0_4] : memref<8x16xf32, #tpu.memory_space<vmem>>, vector<8x16xf32>
    %c0_5 = arith.constant 0 : index
    %c0_6 = arith.constant 0 : index
    %c0_7 = arith.constant 0 : index
    %3 = vector.load %arg8[%c0_5, %c0_6, %c0_7] : memref<8x4x1xf32, #tpu.memory_space<vmem>>, vector<8x1x1xf32>
    %4 = vector.shape_cast %3 : vector<8x1x1xf32> to vector<8x1xf32>
    %c0_8 = arith.constant 0 : index
    %c1 = arith.constant 1 : index
    %c0_9 = arith.constant 0 : index
    %5 = vector.load %arg8[%c0_8, %c1, %c0_9] : memref<8x4x1xf32, #tpu.memory_space<vmem>>, vector<8x1x1xf32>
    %6 = vector.shape_cast %5 : vector<8x1x1xf32> to vector<8x1xf32>
    %c0_10 = arith.constant 0 : index
    %c2 = arith.constant 2 : index
    %c0_11 = arith.constant 0 : index
    %7 = vector.load %arg8[%c0_10, %c2, %c0_11] : memref<8x4x1xf32, #tpu.memory_space<vmem>>, vector<8x1x1xf32>
    %8 = vector.shape_cast %7 : vector<8x1x1xf32> to vector<8x1xf32>
    %c0_12 = arith.constant 0 : index
    %c3 = arith.constant 3 : index
    %c0_13 = arith.constant 0 : index
    %9 = vector.load %arg8[%c0_12, %c3, %c0_13] : memref<8x4x1xf32, #tpu.memory_space<vmem>>, vector<8x1x1xf32>
    %10 = vector.shape_cast %9 : vector<8x1x1xf32> to vector<8x1xf32>
    %11 = arith.maximumf %4, %6 : vector<8x1xf32>
    %12 = arith.maximumf %11, %8 : vector<8x1xf32>
    %13 = arith.maximumf %12, %10 : vector<8x1xf32>
    %14 = arith.subf %4, %13 : vector<8x1xf32>
    %15 = math.exp %14 : vector<8x1xf32>
    %16 = arith.subf %6, %13 : vector<8x1xf32>
    %17 = math.exp %16 : vector<8x1xf32>
    %18 = arith.addf %15, %17 : vector<8x1xf32>
    %19 = arith.subf %8, %13 : vector<8x1xf32>
    %20 = math.exp %19 : vector<8x1xf32>
    %21 = arith.addf %18, %20 : vector<8x1xf32>
    %22 = arith.subf %10, %13 : vector<8x1xf32>
    %23 = math.exp %22 : vector<8x1xf32>
    %24 = arith.addf %21, %23 : vector<8x1xf32>
    %25 = math.log %24 : vector<8x1xf32>
    %26 = arith.addf %13, %25 : vector<8x1xf32>
    %c0_14 = arith.constant 0 : index
    %c0_15 = arith.constant 0 : index
    %c0_16 = arith.constant 0 : index
    %27 = vector.load %arg4[%c0_14, %c0_15, %c0_16] : memref<8x4x16xf32, #tpu.memory_space<vmem>>, vector<8x1x16xf32>
    %28 = vector.shape_cast %27 : vector<8x1x16xf32> to vector<8x16xf32>
    %29 = arith.subf %28, %0 : vector<8x16xf32>
    %30 = arith.mulf %29, %2 : vector<8x16xf32>
    %c0_17 = arith.constant 0 : index
    %c0_18 = arith.constant 0 : index
    %c0_19 = arith.constant 0 : index
    %31 = vector.load %arg5[%c0_17, %c0_18, %c0_19] : memref<8x4x16xf32, #tpu.memory_space<vmem>>, vector<8x1x16xf32>
    %32 = vector.shape_cast %31 : vector<8x1x16xf32> to vector<8x16xf32>
    %33 = arith.subf %32, %1 : vector<8x16xf32>
    %34 = arith.mulf %33, %2 : vector<8x16xf32>
    %c0_20 = arith.constant 0 : index
    %c0_21 = arith.constant 0 : index
    %c0_22 = arith.constant 0 : index
    %35 = vector.load %arg6[%c0_20, %c0_21, %c0_22] : memref<8x4x16xf32, #tpu.memory_space<vmem>>, vector<8x1x16xf32>
    %36 = vector.shape_cast %35 : vector<8x1x16xf32> to vector<8x16xf32>
    %c0_23 = arith.constant 0 : index
    %c0_24 = arith.constant 0 : index
    %c0_25 = arith.constant 0 : index
    %37 = vector.load %arg7[%c0_23, %c0_24, %c0_25] : memref<8x4x16xf32, #tpu.memory_space<vmem>>, vector<8x1x16xf32>
    %38 = vector.shape_cast %37 : vector<8x1x16xf32> to vector<8x16xf32>
    %39 = arith.mulf %36, %38 : vector<8x16xf32>
    %40 = arith.mulf %30, %30 : vector<8x16xf32>
    %41 = arith.mulf %40, %38 : vector<8x16xf32>
    %42 = arith.mulf %34, %34 : vector<8x16xf32>
    %43 = arith.mulf %42, %36 : vector<8x16xf32>
    %44 = arith.addf %41, %43 : vector<8x16xf32>
    %45 = arith.divf %44, %39 : vector<8x16xf32>
    %46 = math.log %39 : vector<8x16xf32>
    %47 = arith.addf %46, %45 : vector<8x16xf32>
    %cst = arith.constant dense<0.000000e+00> : vector<8xf32>
    %48 = vector.multi_reduction <add>, %47, %cst [1] : vector<8x16xf32> to vector<8xf32>
    %49 = vector.shape_cast %48 : vector<8xf32> to vector<8x1xf32>
    %cst_26 = arith.constant 29.4060326 : f32
    %50 = vector.broadcast %cst_26 : f32 to vector<8x1xf32>
    %51 = arith.addf %49, %50 : vector<8x1xf32>
    %cst_27 = arith.constant -5.000000e-01 : f32
    %52 = vector.broadcast %cst_27 : f32 to vector<8x1xf32>
    %53 = arith.mulf %52, %51 : vector<8x1xf32>
    %54 = arith.subf %4, %26 : vector<8x1xf32>
    %55 = arith.addf %53, %54 : vector<8x1xf32>
    %c0_28 = arith.constant 0 : index
    %c1_29 = arith.constant 1 : index
    %c0_30 = arith.constant 0 : index
    %56 = vector.load %arg4[%c0_28, %c1_29, %c0_30] : memref<8x4x16xf32, #tpu.memory_space<vmem>>, vector<8x1x16xf32>
    %57 = vector.shape_cast %56 : vector<8x1x16xf32> to vector<8x16xf32>
    %58 = arith.subf %57, %0 : vector<8x16xf32>
    %59 = arith.mulf %58, %2 : vector<8x16xf32>
    %c0_31 = arith.constant 0 : index
    %c1_32 = arith.constant 1 : index
    %c0_33 = arith.constant 0 : index
    %60 = vector.load %arg5[%c0_31, %c1_32, %c0_33] : memref<8x4x16xf32, #tpu.memory_space<vmem>>, vector<8x1x16xf32>
    %61 = vector.shape_cast %60 : vector<8x1x16xf32> to vector<8x16xf32>
    %62 = arith.subf %61, %1 : vector<8x16xf32>
    %63 = arith.mulf %62, %2 : vector<8x16xf32>
    %c0_34 = arith.constant 0 : index
    %c1_35 = arith.constant 1 : index
    %c0_36 = arith.constant 0 : index
    %64 = vector.load %arg6[%c0_34, %c1_35, %c0_36] : memref<8x4x16xf32, #tpu.memory_space<vmem>>, vector<8x1x16xf32>
    %65 = vector.shape_cast %64 : vector<8x1x16xf32> to vector<8x16xf32>
    %c0_37 = arith.constant 0 : index
    %c1_38 = arith.constant 1 : index
    %c0_39 = arith.constant 0 : index
    %66 = vector.load %arg7[%c0_37, %c1_38, %c0_39] : memref<8x4x16xf32, #tpu.memory_space<vmem>>, vector<8x1x16xf32>
    %67 = vector.shape_cast %66 : vector<8x1x16xf32> to vector<8x16xf32>
    %68 = arith.mulf %65, %67 : vector<8x16xf32>
    %69 = arith.mulf %59, %59 : vector<8x16xf32>
    %70 = arith.mulf %69, %67 : vector<8x16xf32>
    %71 = arith.mulf %63, %63 : vector<8x16xf32>
    %72 = arith.mulf %71, %65 : vector<8x16xf32>
    %73 = arith.addf %70, %72 : vector<8x16xf32>
    %74 = arith.divf %73, %68 : vector<8x16xf32>
    %75 = math.log %68 : vector<8x16xf32>
    %76 = arith.addf %75, %74 : vector<8x16xf32>
    %cst_40 = arith.constant dense<0.000000e+00> : vector<8xf32>
    %77 = vector.multi_reduction <add>, %76, %cst_40 [1] : vector<8x16xf32> to vector<8xf32>
    %78 = vector.shape_cast %77 : vector<8xf32> to vector<8x1xf32>
    %cst_41 = arith.constant 29.4060326 : f32
    %79 = vector.broadcast %cst_41 : f32 to vector<8x1xf32>
    %80 = arith.addf %78, %79 : vector<8x1xf32>
    %cst_42 = arith.constant -5.000000e-01 : f32
    %81 = vector.broadcast %cst_42 : f32 to vector<8x1xf32>
    %82 = arith.mulf %81, %80 : vector<8x1xf32>
    %83 = arith.subf %6, %26 : vector<8x1xf32>
    %84 = arith.addf %82, %83 : vector<8x1xf32>
    %c0_43 = arith.constant 0 : index
    %c2_44 = arith.constant 2 : index
    %c0_45 = arith.constant 0 : index
    %85 = vector.load %arg4[%c0_43, %c2_44, %c0_45] : memref<8x4x16xf32, #tpu.memory_space<vmem>>, vector<8x1x16xf32>
    %86 = vector.shape_cast %85 : vector<8x1x16xf32> to vector<8x16xf32>
    %87 = arith.subf %86, %0 : vector<8x16xf32>
    %88 = arith.mulf %87, %2 : vector<8x16xf32>
    %c0_46 = arith.constant 0 : index
    %c2_47 = arith.constant 2 : index
    %c0_48 = arith.constant 0 : index
    %89 = vector.load %arg5[%c0_46, %c2_47, %c0_48] : memref<8x4x16xf32, #tpu.memory_space<vmem>>, vector<8x1x16xf32>
    %90 = vector.shape_cast %89 : vector<8x1x16xf32> to vector<8x16xf32>
    %91 = arith.subf %90, %1 : vector<8x16xf32>
    %92 = arith.mulf %91, %2 : vector<8x16xf32>
    %c0_49 = arith.constant 0 : index
    %c2_50 = arith.constant 2 : index
    %c0_51 = arith.constant 0 : index
    %93 = vector.load %arg6[%c0_49, %c2_50, %c0_51] : memref<8x4x16xf32, #tpu.memory_space<vmem>>, vector<8x1x16xf32>
    %94 = vector.shape_cast %93 : vector<8x1x16xf32> to vector<8x16xf32>
    %c0_52 = arith.constant 0 : index
    %c2_53 = arith.constant 2 : index
    %c0_54 = arith.constant 0 : index
    %95 = vector.load %arg7[%c0_52, %c2_53, %c0_54] : memref<8x4x16xf32, #tpu.memory_space<vmem>>, vector<8x1x16xf32>
    %96 = vector.shape_cast %95 : vector<8x1x16xf32> to vector<8x16xf32>
    %97 = arith.mulf %94, %96 : vector<8x16xf32>
    %98 = arith.mulf %88, %88 : vector<8x16xf32>
    %99 = arith.mulf %98, %96 : vector<8x16xf32>
    %100 = arith.mulf %92, %92 : vector<8x16xf32>
    %101 = arith.mulf %100, %94 : vector<8x16xf32>
    %102 = arith.addf %99, %101 : vector<8x16xf32>
    %103 = arith.divf %102, %97 : vector<8x16xf32>
    %104 = math.log %97 : vector<8x16xf32>
    %105 = arith.addf %104, %103 : vector<8x16xf32>
    %cst_55 = arith.constant dense<0.000000e+00> : vector<8xf32>
    %106 = vector.multi_reduction <add>, %105, %cst_55 [1] : vector<8x16xf32> to vector<8xf32>
    %107 = vector.shape_cast %106 : vector<8xf32> to vector<8x1xf32>
    %cst_56 = arith.constant 29.4060326 : f32
    %108 = vector.broadcast %cst_56 : f32 to vector<8x1xf32>
    %109 = arith.addf %107, %108 : vector<8x1xf32>
    %cst_57 = arith.constant -5.000000e-01 : f32
    %110 = vector.broadcast %cst_57 : f32 to vector<8x1xf32>
    %111 = arith.mulf %110, %109 : vector<8x1xf32>
    %112 = arith.subf %8, %26 : vector<8x1xf32>
    %113 = arith.addf %111, %112 : vector<8x1xf32>
    %c0_58 = arith.constant 0 : index
    %c3_59 = arith.constant 3 : index
    %c0_60 = arith.constant 0 : index
    %114 = vector.load %arg4[%c0_58, %c3_59, %c0_60] : memref<8x4x16xf32, #tpu.memory_space<vmem>>, vector<8x1x16xf32>
    %115 = vector.shape_cast %114 : vector<8x1x16xf32> to vector<8x16xf32>
    %116 = arith.subf %115, %0 : vector<8x16xf32>
    %117 = arith.mulf %116, %2 : vector<8x16xf32>
    %c0_61 = arith.constant 0 : index
    %c3_62 = arith.constant 3 : index
    %c0_63 = arith.constant 0 : index
    %118 = vector.load %arg5[%c0_61, %c3_62, %c0_63] : memref<8x4x16xf32, #tpu.memory_space<vmem>>, vector<8x1x16xf32>
    %119 = vector.shape_cast %118 : vector<8x1x16xf32> to vector<8x16xf32>
    %120 = arith.subf %119, %1 : vector<8x16xf32>
    %121 = arith.mulf %120, %2 : vector<8x16xf32>
    %c0_64 = arith.constant 0 : index
    %c3_65 = arith.constant 3 : index
    %c0_66 = arith.constant 0 : index
    %122 = vector.load %arg6[%c0_64, %c3_65, %c0_66] : memref<8x4x16xf32, #tpu.memory_space<vmem>>, vector<8x1x16xf32>
    %123 = vector.shape_cast %122 : vector<8x1x16xf32> to vector<8x16xf32>
    %c0_67 = arith.constant 0 : index
    %c3_68 = arith.constant 3 : index
    %c0_69 = arith.constant 0 : index
    %124 = vector.load %arg7[%c0_67, %c3_68, %c0_69] : memref<8x4x16xf32, #tpu.memory_space<vmem>>, vector<8x1x16xf32>
    %125 = vector.shape_cast %124 : vector<8x1x16xf32> to vector<8x16xf32>
    %126 = arith.mulf %123, %125 : vector<8x16xf32>
    %127 = arith.mulf %117, %117 : vector<8x16xf32>
    %128 = arith.mulf %127, %125 : vector<8x16xf32>
    %129 = arith.mulf %121, %121 : vector<8x16xf32>
    %130 = arith.mulf %129, %123 : vector<8x16xf32>
    %131 = arith.addf %128, %130 : vector<8x16xf32>
    %132 = arith.divf %131, %126 : vector<8x16xf32>
    %133 = math.log %126 : vector<8x16xf32>
    %134 = arith.addf %133, %132 : vector<8x16xf32>
    %cst_70 = arith.constant dense<0.000000e+00> : vector<8xf32>
    %135 = vector.multi_reduction <add>, %134, %cst_70 [1] : vector<8x16xf32> to vector<8xf32>
    %136 = vector.shape_cast %135 : vector<8xf32> to vector<8x1xf32>
    %cst_71 = arith.constant 29.4060326 : f32
    %137 = vector.broadcast %cst_71 : f32 to vector<8x1xf32>
    %138 = arith.addf %136, %137 : vector<8x1xf32>
    %cst_72 = arith.constant -5.000000e-01 : f32
    %139 = vector.broadcast %cst_72 : f32 to vector<8x1xf32>
    %140 = arith.mulf %139, %138 : vector<8x1xf32>
    %141 = arith.subf %10, %26 : vector<8x1xf32>
    %142 = arith.addf %140, %141 : vector<8x1xf32>
    %143 = arith.maximumf %55, %84 : vector<8x1xf32>
    %144 = arith.maximumf %143, %113 : vector<8x1xf32>
    %145 = arith.maximumf %144, %142 : vector<8x1xf32>
    %146 = arith.subf %55, %145 : vector<8x1xf32>
    %147 = math.exp %146 : vector<8x1xf32>
    %148 = arith.subf %84, %145 : vector<8x1xf32>
    %149 = math.exp %148 : vector<8x1xf32>
    %150 = arith.addf %147, %149 : vector<8x1xf32>
    %151 = arith.subf %113, %145 : vector<8x1xf32>
    %152 = math.exp %151 : vector<8x1xf32>
    %153 = arith.addf %150, %152 : vector<8x1xf32>
    %154 = arith.subf %142, %145 : vector<8x1xf32>
    %155 = math.exp %154 : vector<8x1xf32>
    %156 = arith.addf %153, %155 : vector<8x1xf32>
    %157 = math.log %156 : vector<8x1xf32>
    %158 = arith.addf %145, %157 : vector<8x1xf32>
    %c0_73 = arith.constant 0 : index
    %c0_74 = arith.constant 0 : index
    %159 = vector.load %arg9[%c0_73, %c0_74] : memref<8x1xf32, #tpu.memory_space<vmem>>, vector<8x1xf32>
    tpu.vector_store %arg9[%c0_73, %c0_74], %158 {strides = array<i32>} : memref<8x1xf32, #tpu.memory_space<vmem>>, vector<8x1xf32>,
    return
  }
  func.func @transform_0(%arg0: i32) -> (i32, i32) {
    %c0_i32 = arith.constant 0 : i32
    %c0_i32_0 = arith.constant 0 : i32
    return %arg0, %c0_i32 : i32, i32
  }
  func.func @transform_1(%arg0: i32) -> (i32, i32) {
    %c0_i32 = arith.constant 0 : i32
    %c0_i32_0 = arith.constant 0 : i32
    return %arg0, %c0_i32 : i32, i32
  }
  func.func @transform_2(%arg0: i32) -> (i32, i32) {
    %c0_i32 = arith.constant 0 : i32
    %c0_i32_0 = arith.constant 0 : i32
    return %arg0, %c0_i32 : i32, i32
  }
  func.func @transform_3(%arg0: i32) -> (i32, i32, i32) {
    %c0_i32 = arith.constant 0 : i32
    %c0_i32_0 = arith.constant 0 : i32
    %c0_i32_1 = arith.constant 0 : i32
    return %arg0, %c0_i32, %c0_i32_0 : i32, i32, i32
  }
  func.func @transform_4(%arg0: i32) -> (i32, i32, i32) {
    %c0_i32 = arith.constant 0 : i32
    %c0_i32_0 = arith.constant 0 : i32
    %c0_i32_1 = arith.constant 0 : i32
    return %arg0, %c0_i32, %c0_i32_0 : i32, i32, i32
  }
  func.func @transform_5(%arg0: i32) -> (i32, i32, i32) {
    %c0_i32 = arith.constant 0 : i32
    %c0_i32_0 = arith.constant 0 : i32
    %c0_i32_1 = arith.constant 0 : i32
    return %arg0, %c0_i32, %c0_i32_0 : i32, i32, i32
  }
  func.func @transform_6(%arg0: i32) -> (i32, i32, i32) {
    %c0_i32 = arith.constant 0 : i32
    %c0_i32_0 = arith.constant 0 : i32
    %c0_i32_1 = arith.constant 0 : i32
    return %arg0, %c0_i32, %c0_i32_0 : i32, i32, i32
  }
  func.func @transform_7(%arg0: i32) -> (i32, i32, i32) {
    %c0_i32 = arith.constant 0 : i32
    %c0_i32_0 = arith.constant 0 : i32
    %c0_i32_1 = arith.constant 0 : i32
    return %arg0, %c0_i32, %c0_i32_0 : i32, i32, i32
  }
  func.func @transform_8(%arg0: i32) -> (i32, i32) {
    %c0_i32 = arith.constant 0 : i32
    %c0_i32_0 = arith.constant 0 : i32
    return %arg0, %c0_i32 : i32, i32
  }
}

</mosaic_0001>

<llo_original>
// kernel: tpu_custom_call.1
$region0: #{tpu_custom_call.1}
  #allocation0 [shape = 'u32[]', space=smem, size = 0x4, offset = 0x4, fixed_abs, tag = 'smem constant byte address 0x4 - core index']
  #allocation1 [shape = 'u32[144,128]{1,0:T(1,128)}', space=vmem, size = 0x12000, scoped, tag = 'internal scratch']
  %s0 = inlined_call_operand.hbm [shape: f32[16,16], index: 0, kind: input, shape index: {}]
  %s1 = inlined_call_operand.hbm [shape: f32[16,16], index: 1, kind: input, shape index: {}]
  %s2 = inlined_call_operand.hbm [shape: f32[16,16], index: 2, kind: input, shape index: {}]
  %s3 = inlined_call_operand.vmem [shape: f32[16,4,16], index: 3, kind: input, shape index: {}]
  %s4 = inlined_call_operand.hbm [shape: f32[16,4,16], index: 4, kind: input, shape index: {}]
  %s5 = inlined_call_operand.hbm [shape: f32[16,4,16], index: 5, kind: input, shape index: {}]
  %s6 = inlined_call_operand.hbm [shape: f32[16,4,16], index: 6, kind: input, shape index: {}]
  %s7 = inlined_call_operand.vmem [shape: f32[16,4,1], index: 7, kind: input, shape index: {}]
  %s8 = inlined_call_operand.vmem [shape: f32[16,1], index: 8, kind: output, shape index: {}]
  %s9 = sld [smem:[#allocation0]]
  $region89: #{tpu_custom_call.1} parent=0
    _
  %s11 = ssub.s32 1, %s9
  %s12 = scalar_select 0, %s11, %s9
  $region1: #{tpu_custom_call.1} parent=0
    #allocation2 [shape = 'u8[8192]{0}', space=vmem, size = 0x2000, scoped, tag = 'input window, operand 0']
    #allocation3 [shape = 's32[2]{0}', space=sflag, size = 0x8, scoped, tag = 'scoped memory for tpu_custom_call.1']
    #allocation4 [shape = 'u8[8192]{0}', space=vmem, size = 0x2000, scoped, tag = 'input window, operand 1']
    #allocation5 [shape = 's32[2]{0}', space=sflag, size = 0x8, scoped, tag = 'scoped memory for tpu_custom_call.1']
    #allocation6 [shape = 'u8[8192]{0}', space=vmem, size = 0x2000, scoped, tag = 'input window, operand 2']
    #allocation7 [shape = 'u8[32768]{0}', space=vmem, size = 0x8000, scoped, tag = 'input window, operand 4']
    #allocation8 [shape = 's32[2]{0}', space=sflag, size = 0x8, scoped, tag = 'scoped memory for tpu_custom_call.1']
    #allocation9 [shape = 'u8[32768]{0}', space=vmem, size = 0x8000, scoped, tag = 'input window, operand 5']
    #allocation10 [shape = 'u8[32768]{0}', space=vmem, size = 0x8000, scoped, tag = 'input window, operand 6']
    #allocation11 [shape = 's32[2]{0}', space=sflag, size = 0x8, scoped, tag = 'scoped memory for tpu_custom_call.1']
    %13 = vsyncpa [#allocation3], 0
    %s14 = scalar_lea.sflag [#allocation3], 1
    %15 = vsyncpa %s14, 0
    %16 = vsyncpa [#allocation5], 0
    %s17 = scalar_lea.sflag [#allocation5], 1
    %18 = vsyncpa %s17, 0
    %19 = vsyncpa [#allocation8], 0
    %s20 = scalar_lea.sflag [#allocation8], 1
    %21 = vsyncpa %s20, 0
    %22 = vsyncpa [#allocation11], 0
    %s23 = scalar_lea.sflag [#allocation11], 1
    %24 = vsyncpa %s23, 0
    loop: start=0, step=1, limit=4
    $region2: #{tpu_custom_call.1} parent=1 // loop_pre_header
      _
    $region3: #{tpu_custom_call.1} parent=1 // loop_header
      %s26 = sphi 0, %s30
      %p27 = scmp.ge.s32.totalorder %s26, 4
      %s36 = sphi 0, %s38
      %s39 = sphi 0, %s36
      %s40 = sphi 0, %s39
      %s56 = sphi 0, %s40
      %s62 = sphi 0, %s64
      %s65 = sphi 0, %s62
      %s66 = sphi 0, %s65
      %s82 = sphi 0, %s66
      %s88 = sphi 0, %s90
      %s91 = sphi 0, %s88
      %s92 = sphi 0, %s91
      %s108 = sphi 0, %s92
      %s114 = sphi 0, %s116
      %s117 = sphi 0, %s114
      %s118 = sphi 0, %s117
      %s134 = sphi 0, %s118
      %s140 = sphi 0, %s142
      %s143 = sphi 0, %s140
      %s144 = sphi 0, %s143
      %s160 = sphi 0, %s144
      %s166 = sphi 0, %s168
      %s169 = sphi 0, %s166
      %s170 = sphi 0, %s169
      %s186 = sphi 0, %s170
      %s192 = sphi 0, %s194
      %s195 = sphi 0, %s192
      %s196 = sphi 0, %s195
      %s212 = sphi 0, %s196
      %s218 = sphi 0, %s220
      %s221 = sphi 0, %s218
      %s222 = sphi 0, %s221
      %s238 = sphi 0, %s222
      %s244 = sphi 0, %s246
      %s247 = sphi 0, %s244
      %s248 = sphi 0, %s247
      %s264 = sphi 0, %s248
    $region4: #{tpu_custom_call.1} parent=1 // loop_header_branch
      %29 = sbr.rel (%p27) target = $region8
    $region5: #{tpu_custom_call.1} parent=1 // loop_body
      %s31 = ssub.s32 %s26, 1
      %s32 = ssub.s32 %s26, 2
      %s33 = sadd.s32 %s26, 1
      %s34 = ssub.s32 %s26, %s33
      %p35 = scmp.eq.s32.totalorder %s34, 0
      %s37 = sadd.s32 %s36, 1
      %s38 = scalar_select %p35, %s36, %s37
      %p41 = pneg %p35
      %p42 = scmp.eq.s32.totalorder %s26, 1
      %p43 = por %p41, %p42
      %p44 = scmp.ne.s32.totalorder %s36, %s39
      %p45 = scmp.eq.s32.totalorder %s26, 0
      %p46 = por %p44, %p45
      %p47 = scmp.ne.s32.totalorder %s36, %s39
      %p48 = scmp.eq.s32.totalorder %s31, 1
      %p49 = por %p47, %p48
      %p50 = scmp.ne.s32.totalorder %s39, %s40
      %p51 = scmp.eq.s32.totalorder %s31, 0
      %p52 = por %p50, %p51
      %p53 = scmp.ne.s32.totalorder %s39, %s40
      %p54 = scmp.eq.s32.totalorder %s32, 1
      %p55 = por %p53, %p54
      %p57 = scmp.ne.s32.totalorder %s40, %s56
      %p58 = scmp.eq.s32.totalorder %s32, 0
      %p59 = por %p57, %p58
      %s60 = ssub.s32 %s26, %s33
      %p61 = scmp.eq.s32.totalorder %s60, 0
      %s63 = sadd.s32 %s62, 1
      %s64 = scalar_select %p61, %s62, %s63
      %p67 = pneg %p61
      %p68 = scmp.eq.s32.totalorder %s26, 1
      %p69 = por %p67, %p68
      %p70 = scmp.ne.s32.totalorder %s62, %s65
      %p71 = scmp.eq.s32.totalorder %s26, 0
      %p72 = por %p70, %p71
      %p73 = scmp.ne.s32.totalorder %s62, %s65
      %p74 = scmp.eq.s32.totalorder %s31, 1
      %p75 = por %p73, %p74
      %p76 = scmp.ne.s32.totalorder %s65, %s66
      %p77 = scmp.eq.s32.totalorder %s31, 0
      %p78 = por %p76, %p77
      %p79 = scmp.ne.s32.totalorder %s65, %s66
      %p80 = scmp.eq.s32.totalorder %s32, 1
      %p81 = por %p79, %p80
      %p83 = scmp.ne.s32.totalorder %s66, %s82
      %p84 = scmp.eq.s32.totalorder %s32, 0
      %p85 = por %p83, %p84
      %s86 = ssub.s32 %s26, %s33
      %p87 = scmp.eq.s32.totalorder %s86, 0
      %s89 = sadd.s32 %s88, 1
      %s90 = scalar_select %p87, %s88, %s89
      %p93 = pneg %p87
      %p94 = scmp.eq.s32.totalorder %s26, 1
      %p95 = por %p93, %p94
      %p96 = scmp.ne.s32.totalorder %s88, %s91
      %p97 = scmp.eq.s32.totalorder %s26, 0
      %p98 = por %p96, %p97
      %p99 = scmp.ne.s32.totalorder %s88, %s91
      %p100 = scmp.eq.s32.totalorder %s31, 1
      %p101 = por %p99, %p100
      %p102 = scmp.ne.s32.totalorder %s91, %s92
      %p103 = scmp.eq.s32.totalorder %s31, 0
      %p104 = por %p102, %p103
      %p105 = scmp.ne.s32.totalorder %s91, %s92
      %p106 = scmp.eq.s32.totalorder %s32, 1
      %p107 = por %p105, %p106
      %p109 = scmp.ne.s32.totalorder %s92, %s108
      %p110 = scmp.eq.s32.totalorder %s32, 0
      %p111 = por %p109, %p110
      %s112 = ssub.s32 %s26, %s33
      %p113 = scmp.eq.s32.totalorder %s112, 0
      %s115 = sadd.s32 %s114, 1
      %s116 = scalar_select %p113, %s114, %s115
      %p119 = pneg %p113
      %p120 = scmp.eq.s32.totalorder %s26, 1
      %p121 = por %p119, %p120
      %p122 = scmp.ne.s32.totalorder %s114, %s117
      %p123 = scmp.eq.s32.totalorder %s26, 0
      %p124 = por %p122, %p123
      %p125 = scmp.ne.s32.totalorder %s114, %s117
      %p126 = scmp.eq.s32.totalorder %s31, 1
      %p127 = por %p125, %p126
      %p128 = scmp.ne.s32.totalorder %s117, %s118
      %p129 = scmp.eq.s32.totalorder %s31, 0
      %p130 = por %p128, %p129
      %p131 = scmp.ne.s32.totalorder %s117, %s118
      %p132 = scmp.eq.s32.totalorder %s32, 1
      %p133 = por %p131, %p132
      %p135 = scmp.ne.s32.totalorder %s118, %s134
      %p136 = scmp.eq.s32.totalorder %s32, 0
      %p137 = por %p135, %p136
      %s138 = ssub.s32 %s26, %s33
      %p139 = scmp.eq.s32.totalorder %s138, 0
      %s141 = sadd.s32 %s140, 1
      %s142 = scalar_select %p139, %s140, %s141
      %p145 = pneg %p139
      %p146 = scmp.eq.s32.totalorder %s26, 1
      %p147 = por %p145, %p146
      %p148 = scmp.ne.s32.totalorder %s140, %s143
      %p149 = scmp.eq.s32.totalorder %s26, 0
      %p150 = por %p148, %p149
      %p151 = scmp.ne.s32.totalorder %s140, %s143
      %p152 = scmp.eq.s32.totalorder %s31, 1
      %p153 = por %p151, %p152
      %p154 = scmp.ne.s32.totalorder %s143, %s144
      %p155 = scmp.eq.s32.totalorder %s31, 0
      %p156 = por %p154, %p155
      %p157 = scmp.ne.s32.totalorder %s143, %s144
      %p158 = scmp.eq.s32.totalorder %s32, 1
      %p159 = por %p157, %p158
      %p161 = scmp.ne.s32.totalorder %s144, %s160
      %p162 = scmp.eq.s32.totalorder %s32, 0
      %p163 = por %p161, %p162
      %s164 = ssub.s32 %s26, %s33
      %p165 = scmp.eq.s32.totalorder %s164, 0
      %s167 = sadd.s32 %s166, 1
      %s168 = scalar_select %p165, %s166, %s167
      %p171 = pneg %p165
      %p172 = scmp.eq.s32.totalorder %s26, 1
      %p173 = por %p171, %p172
      %p174 = scmp.ne.s32.totalorder %s166, %s169
      %p175 = scmp.eq.s32.totalorder %s26, 0
      %p176 = por %p174, %p175
      %p177 = scmp.ne.s32.totalorder %s166, %s169
      %p178 = scmp.eq.s32.totalorder %s31, 1
      %p179 = por %p177, %p178
      %p180 = scmp.ne.s32.totalorder %s169, %s170
      %p181 = scmp.eq.s32.totalorder %s31, 0
      %p182 = por %p180, %p181
      %p183 = scmp.ne.s32.totalorder %s169, %s170
      %p184 = scmp.eq.s32.totalorder %s32, 1
      %p185 = por %p183, %p184
      %p187 = scmp.ne.s32.totalorder %s170, %s186
      %p188 = scmp.eq.s32.totalorder %s32, 0
      %p189 = por %p187, %p188
      %s190 = ssub.s32 %s26, %s33
      %p191 = scmp.eq.s32.totalorder %s190, 0
      %s193 = sadd.s32 %s192, 1
      %s194 = scalar_select %p191, %s192, %s193
      %p197 = pneg %p191
      %p198 = scmp.eq.s32.totalorder %s26, 1
      %p199 = por %p197, %p198
      %p200 = scmp.ne.s32.totalorder %s192, %s195
      %p201 = scmp.eq.s32.totalorder %s26, 0
      %p202 = por %p200, %p201
      %p203 = scmp.ne.s32.totalorder %s192, %s195
      %p204 = scmp.eq.s32.totalorder %s31, 1
      %p205 = por %p203, %p204
      %p206 = scmp.ne.s32.totalorder %s195, %s196
      %p207 = scmp.eq.s32.totalorder %s31, 0
      %p208 = por %p206, %p207
      %p209 = scmp.ne.s32.totalorder %s195, %s196
      %p210 = scmp.eq.s32.totalorder %s32, 1
      %p211 = por %p209, %p210
      %p213 = scmp.ne.s32.totalorder %s196, %s212
      %p214 = scmp.eq.s32.totalorder %s32, 0
      %p215 = por %p213, %p214
      %s216 = ssub.s32 %s26, %s33
      %p217 = scmp.eq.s32.totalorder %s216, 0
      %s219 = sadd.s32 %s218, 1
      %s220 = scalar_select %p217, %s218, %s219
      %p223 = pneg %p217
      %p224 = scmp.eq.s32.totalorder %s26, 1
      %p225 = por %p223, %p224
      %p226 = scmp.ne.s32.totalorder %s218, %s221
      %p227 = scmp.eq.s32.totalorder %s26, 0
      %p228 = por %p226, %p227
      %p229 = scmp.ne.s32.totalorder %s218, %s221
      %p230 = scmp.eq.s32.totalorder %s31, 1
      %p231 = por %p229, %p230
      %p232 = scmp.ne.s32.totalorder %s221, %s222
      %p233 = scmp.eq.s32.totalorder %s31, 0
      %p234 = por %p232, %p233
      %p235 = scmp.ne.s32.totalorder %s221, %s222
      %p236 = scmp.eq.s32.totalorder %s32, 1
      %p237 = por %p235, %p236
      %p239 = scmp.ne.s32.totalorder %s222, %s238
      %p240 = scmp.eq.s32.totalorder %s32, 0
      %p241 = por %p239, %p240
      %s242 = ssub.s32 %s26, %s33
      %p243 = scmp.eq.s32.totalorder %s242, 0
      %s245 = sadd.s32 %s244, 1
      %s246 = scalar_select %p243, %s244, %s245
      %p249 = pneg %p243
      %p250 = scmp.eq.s32.totalorder %s26, 1
      %p251 = por %p249, %p250
      %p252 = scmp.ne.s32.totalorder %s244, %s247
      %p253 = scmp.eq.s32.totalorder %s26, 0
      %p254 = por %p252, %p253
      %p255 = scmp.ne.s32.totalorder %s244, %s247
      %p256 = scmp.eq.s32.totalorder %s31, 1
      %p257 = por %p255, %p256
      %p258 = scmp.ne.s32.totalorder %s247, %s248
      %p259 = scmp.eq.s32.totalorder %s31, 0
      %p260 = por %p258, %p259
      %p261 = scmp.ne.s32.totalorder %s247, %s248
      %p262 = scmp.eq.s32.totalorder %s32, 1
      %p263 = por %p261, %p262
      %p265 = scmp.ne.s32.totalorder %s248, %s264
      %p266 = scmp.eq.s32.totalorder %s32, 0
      %p267 = por %p265, %p266
      %p268 = scmp.le.s32.totalorder 1, %s26
      %p269 = scmp.lt.s32.totalorder %s26, 3
      %p270 = pnand %p268, %p269
      %p271 = pneg %p270
      // Predicated region
      $region9: #{tpu_custom_call.1} parent=5 // pred_check
        _
      $region10: #{tpu_custom_call.1} parent=5 // pred_check_branch
        %273 = sbr.rel (%p270) target = $region12
      $region11: #{tpu_custom_call.1} parent=5 // pred_region
        %s274 = ssub.s32 %s26, 1
      $region12: #{tpu_custom_call.1} parent=5 // pred_fallthru
        _
      %p275 = scmp.lt.s32.totalorder %s26, 2
      // Predicated region
      $region13: #{tpu_custom_call.1} parent=5 // pred_check
        %p276 = pneg %p275
      $region14: #{tpu_custom_call.1} parent=5 // pred_check_branch
        %278 = sbr.rel (%p276) target = $region16
      $region15: #{tpu_custom_call.1} parent=5 // pred_region
        // Predicated region
        $region17: #{tpu_custom_call.1} parent=15 // pred_check
          %p279 = pneg %p46
        $region18: #{tpu_custom_call.1} parent=15 // pred_check_branch
          %281 = sbr.rel (%p279) target = $region20
        $region19: #{tpu_custom_call.1} parent=15 // pred_region
          %s282 = sand.u32 %s36, 1
          %s283 = scalar_lea.sflag [#allocation3], %s282
          %s284 = sand.u32 %s36, 1
          %s285 = smul.addr %s284, 8
          %s286 = scalar_lea.vmem [#allocation2], %s285
          %s288 = ssub.s32 128, 128
          %289 = vsyncadd %s283, %s288
          %s290 = smul.addr %s26, 128
          %s291 = scalar_lea.hbm %s0, %s290
          %s293 = sshll.u32 %s286, 4
          %s294 = int_to_ptr.vmem [resolvable:$true] %s293
          %296 = dma.hbm_to_vmem [thread:$0]  %s291, 128, %s294, %s283
        $region20: #{tpu_custom_call.1} parent=15 // pred_fallthru
          _
        // Predicated region
        $region21: #{tpu_custom_call.1} parent=15 // pred_check
          %p297 = pneg %p72
        $region22: #{tpu_custom_call.1} parent=15 // pred_check_branch
          %299 = sbr.rel (%p297) target = $region24
        $region23: #{tpu_custom_call.1} parent=15 // pred_region
          %s300 = sand.u32 %s26, 1
          %s301 = scalar_lea.sflag [#allocation5], %s300
          %s302 = sand.u32 %s62, 1
          %s303 = smul.addr %s302, 8
          %s304 = scalar_lea.vmem [#allocation4], %s303
          %s306 = ssub.s32 128, 128
          %307 = vsyncadd %s301, %s306
          %s308 = smul.addr %s26, 128
          %s309 = scalar_lea.hbm %s1, %s308
          %s311 = sshll.u32 %s304, 4
          %s312 = int_to_ptr.vmem [resolvable:$true] %s311
          %314 = dma.hbm_to_vmem [thread:$0]  %s309, 128, %s312, %s301
        $region24: #{tpu_custom_call.1} parent=15 // pred_fallthru
          _
        // Predicated region
        $region25: #{tpu_custom_call.1} parent=15 // pred_check
          %p315 = pneg %p98
        $region26: #{tpu_custom_call.1} parent=15 // pred_check_branch
          %317 = sbr.rel (%p315) target = $region28
        $region27: #{tpu_custom_call.1} parent=15 // pred_region
          %s318 = sand.u32 %s26, 1
          %s319 = scalar_lea.sflag [#allocation5], %s318
          %s320 = sand.u32 %s88, 1
          %s321 = smul.addr %s320, 8
          %s322 = scalar_lea.vmem [#allocation6], %s321
          %s324 = ssub.s32 128, 128
          %325 = vsyncadd %s319, %s324
          %s326 = smul.addr %s26, 128
          %s327 = scalar_lea.hbm %s2, %s326
          %s329 = sshll.u32 %s322, 4
          %s330 = int_to_ptr.vmem [resolvable:$true] %s329
          %332 = dma.hbm_to_vmem [thread:$0]  %s327, 128, %s330, %s319
        $region28: #{tpu_custom_call.1} parent=15 // pred_fallthru
          _
        // Predicated region
        $region29: #{tpu_custom_call.1} parent=15 // pred_check
          %p333 = pneg %p124
        $region30: #{tpu_custom_call.1} parent=15 // pred_check_branch
          %335 = sbr.rel (%p333) target = $region32
        $region31: #{tpu_custom_call.1} parent=15 // pred_region
          %s336 = smul.u32 8, %s26
          %p337 = scmp.lt.s32.totalorder %s336, 15
          %s338 = scalar_select %p337, %s336, 15
          %s339 = smul.addr %s338, 4
          %s340 = scalar_lea.vmem %s3, %s339
          %s341 = smul.u32 8, %s26
        $region32: #{tpu_custom_call.1} parent=15 // pred_fallthru
          _
        // Predicated region
        $region33: #{tpu_custom_call.1} parent=15 // pred_check
          %p342 = pneg %p150
        $region34: #{tpu_custom_call.1} parent=15 // pred_check_branch
          %344 = sbr.rel (%p342) target = $region36
        $region35: #{tpu_custom_call.1} parent=15 // pred_region
          %s345 = sand.u32 %s26, 1
          %s346 = scalar_lea.sflag [#allocation8], %s345
          %s347 = sand.u32 %s140, 1
          %s348 = smul.addr %s347, 32
          %s349 = scalar_lea.vmem [#allocation7], %s348
          %s350 = smul.u32 8, %s26
          %s352 = ssub.s32 512, 512
          %353 = vsyncadd %s346, %s352
          %s354 = smul.addr %s350, 64
          %s355 = scalar_lea.hbm %s4, %s354
          %s356 = sshll.u32 %s349, 4
          %s357 = int_to_ptr.vmem [resolvable:$true] %s356
          %362 = dma.hbm_to_vmem [thread:$0]  %s355, 512, %s357, %s346, 64, 64, 4
        $region36: #{tpu_custom_call.1} parent=15 // pred_fallthru
          _
        // Predicated region
        $region37: #{tpu_custom_call.1} parent=15 // pred_check
          %p363 = pneg %p176
        $region38: #{tpu_custom_call.1} parent=15 // pred_check_branch
          %365 = sbr.rel (%p363) target = $region40
        $region39: #{tpu_custom_call.1} parent=15 // pred_region
          %s366 = sand.u32 %s26, 1
          %s367 = scalar_lea.sflag [#allocation8], %s366
          %s368 = sand.u32 %s166, 1
          %s369 = smul.addr %s368, 32
          %s370 = scalar_lea.vmem [#allocation9], %s369
          %s371 = smul.u32 8, %s26
          %s373 = ssub.s32 512, 512
          %374 = vsyncadd %s367, %s373
          %s375 = smul.addr %s371, 64
          %s376 = scalar_lea.hbm %s5, %s375
          %s377 = sshll.u32 %s370, 4
          %s378 = int_to_ptr.vmem [resolvable:$true] %s377
          %383 = dma.hbm_to_vmem [thread:$0]  %s376, 512, %s378, %s367, 64, 64, 4
        $region40: #{tpu_custom_call.1} parent=15 // pred_fallthru
          _
        // Predicated region
        $region41: #{tpu_custom_call.1} parent=15 // pred_check
          %p384 = pneg %p202
        $region42: #{tpu_custom_call.1} parent=15 // pred_check_branch
          %386 = sbr.rel (%p384) target = $region44
        $region43: #{tpu_custom_call.1} parent=15 // pred_region
          %s387 = sand.u32 %s192, 1
          %s388 = scalar_lea.sflag [#allocation11], %s387
          %s389 = sand.u32 %s192, 1
          %s390 = smul.addr %s389, 32
          %s391 = scalar_lea.vmem [#allocation10], %s390
          %s392 = smul.u32 8, %s26
          %s394 = ssub.s32 512, 512
          %395 = vsyncadd %s388, %s394
          %s396 = smul.addr %s392, 64
          %s397 = scalar_lea.hbm %s6, %s396
          %s398 = sshll.u32 %s391, 4
          %s399 = int_to_ptr.vmem [resolvable:$true] %s398
          %404 = dma.hbm_to_vmem [thread:$0]  %s397, 512, %s399, %s388, 64, 64, 4
        $region44: #{tpu_custom_call.1} parent=15 // pred_fallthru
          _
        // Predicated region
        $region45: #{tpu_custom_call.1} parent=15 // pred_check
          %p405 = pneg %p228
        $region46: #{tpu_custom_call.1} parent=15 // pred_check_branch
          %407 = sbr.rel (%p405) target = $region48
        $region47: #{tpu_custom_call.1} parent=15 // pred_region
          %s408 = smul.u32 8, %s26
          %p409 = scmp.lt.s32.totalorder %s408, 15
          %s410 = scalar_select %p409, %s408, 15
          %s411 = smul.addr %s410, 4
          %s412 = scalar_lea.vmem %s7, %s411
          %s413 = smul.u32 8, %s26
        $region48: #{tpu_custom_call.1} parent=15 // pred_fallthru
          _
      $region16: #{tpu_custom_call.1} parent=5 // pred_fallthru
        _
      %p414 = scmp.le.s32.totalorder 1, %s26
      %p415 = scmp.lt.s32.totalorder %s26, 3
      %p416 = pnand %p414, %p415
      %p417 = pneg %p416
      // Predicated region
      $region49: #{tpu_custom_call.1} parent=5 // pred_check
        _
      $region50: #{tpu_custom_call.1} parent=5 // pred_check_branch
        %419 = sbr.rel (%p416) target = $region52
      $region51: #{tpu_custom_call.1} parent=5 // pred_region
        %s420 = ssub.s32 %s26, 1
        %s421 = sand.u32 %s39, 1
        %s422 = scalar_lea.sflag [#allocation3], %s421
        %s423 = sand.u32 %s39, 1
        %s424 = smul.addr %s423, 8
        %s425 = scalar_lea.vmem [#allocation2], %s424
        // Predicated region
        $region53: #{tpu_custom_call.1} parent=51 // pred_check
          %p426 = pneg %p52
        $region54: #{tpu_custom_call.1} parent=51 // pred_check_branch
          %428 = sbr.rel (%p426) target = $region56
        $region55: #{tpu_custom_call.1} parent=51 // pred_region
          %429 = dma.done %s422, 128
        $region56: #{tpu_custom_call.1} parent=51 // pred_fallthru
          _
        %s430 = sand.u32 %s31, 1
        %s431 = scalar_lea.sflag [#allocation5], %s430
        %s432 = sand.u32 %s65, 1
        %s433 = smul.addr %s432, 8
        %s434 = scalar_lea.vmem [#allocation4], %s433
        // Predicated region
        $region57: #{tpu_custom_call.1} parent=51 // pred_check
          %p435 = pneg %p78
        $region58: #{tpu_custom_call.1} parent=51 // pred_check_branch
          %437 = sbr.rel (%p435) target = $region60
        $region59: #{tpu_custom_call.1} parent=51 // pred_region
          %438 = dma.done %s431, 128
        $region60: #{tpu_custom_call.1} parent=51 // pred_fallthru
          _
        %s439 = sand.u32 %s31, 1
        %s440 = scalar_lea.sflag [#allocation5], %s439
        %s441 = sand.u32 %s91, 1
        %s442 = smul.addr %s441, 8
        %s443 = scalar_lea.vmem [#allocation6], %s442
        // Predicated region
        $region61: #{tpu_custom_call.1} parent=51 // pred_check
          %p444 = pneg %p104
        $region62: #{tpu_custom_call.1} parent=51 // pred_check_branch
          %446 = sbr.rel (%p444) target = $region64
        $region63: #{tpu_custom_call.1} parent=51 // pred_region
          %447 = dma.done %s440, 128
        $region64: #{tpu_custom_call.1} parent=51 // pred_fallthru
          _
        %s448 = sand.u32 %s31, 1
        %s449 = scalar_lea.sflag [#allocation8], %s448
        %s450 = sand.u32 %s143, 1
        %s451 = smul.addr %s450, 32
        %s452 = scalar_lea.vmem [#allocation7], %s451
        // Predicated region
        $region65: #{tpu_custom_call.1} parent=51 // pred_check
          %p453 = pneg %p156
        $region66: #{tpu_custom_call.1} parent=51 // pred_check_branch
          %455 = sbr.rel (%p453) target = $region68
        $region67: #{tpu_custom_call.1} parent=51 // pred_region
          %456 = dma.done %s449, 512
        $region68: #{tpu_custom_call.1} parent=51 // pred_fallthru
          _
        %s457 = sand.u32 %s31, 1
        %s458 = scalar_lea.sflag [#allocation8], %s457
        %s459 = sand.u32 %s169, 1
        %s460 = smul.addr %s459, 32
        %s461 = scalar_lea.vmem [#allocation9], %s460
        // Predicated region
        $region69: #{tpu_custom_call.1} parent=51 // pred_check
          %p462 = pneg %p182
        $region70: #{tpu_custom_call.1} parent=51 // pred_check_branch
          %464 = sbr.rel (%p462) target = $region72
        $region71: #{tpu_custom_call.1} parent=51 // pred_region
          %465 = dma.done %s458, 512
        $region72: #{tpu_custom_call.1} parent=51 // pred_fallthru
          _
        %s466 = sand.u32 %s195, 1
        %s467 = scalar_lea.sflag [#allocation11], %s466
        %s468 = sand.u32 %s195, 1
        %s469 = smul.addr %s468, 32
        %s470 = scalar_lea.vmem [#allocation10], %s469
        // Predicated region
        $region73: #{tpu_custom_call.1} parent=51 // pred_check
          %p471 = pneg %p208
        $region74: #{tpu_custom_call.1} parent=51 // pred_check_branch
          %473 = sbr.rel (%p471) target = $region76
        $region75: #{tpu_custom_call.1} parent=51 // pred_region
          %474 = dma.done %s467, 512
        $region76: #{tpu_custom_call.1} parent=51 // pred_fallthru
          _
        %s475 = sand.u32 %s39, 1
        %s476 = scalar_lea.sflag [#allocation3], %s475
        %s477 = sand.u32 %s39, 1
        %s478 = smul.addr %s477, 8
        %s479 = scalar_lea.vmem [#allocation2], %s478
        %p480 = pneg %p52
        %p481 = pneg %p49
        %s482 = sand.u32 %s31, 1
        %s483 = scalar_lea.sflag [#allocation5], %s482
        %s484 = sand.u32 %s65, 1
        %s485 = smul.addr %s484, 8
        %s486 = scalar_lea.vmem [#allocation4], %s485
        %p487 = pneg %p78
        %p488 = pneg %p75
        %s489 = sand.u32 %s31, 1
        %s490 = scalar_lea.sflag [#allocation5], %s489
        %s491 = sand.u32 %s91, 1
        %s492 = smul.addr %s491, 8
        %s493 = scalar_lea.vmem [#allocation6], %s492
        %p494 = pneg %p104
        %p495 = pneg %p101
        %s496 = smul.u32 8, %s31
        %p497 = scmp.lt.s32.totalorder %s496, 15
        %s498 = scalar_select %p497, %s496, 15
        %s499 = smul.addr %s498, 4
        %s500 = scalar_lea.vmem %s3, %s499
        %p501 = pneg %p130
        %p502 = pneg %p127
        %s503 = sand.u32 %s31, 1
        %s504 = scalar_lea.sflag [#allocation8], %s503
        %s505 = sand.u32 %s143, 1
        %s506 = smul.addr %s505, 32
        %s507 = scalar_lea.vmem [#allocation7], %s506
        %p508 = pneg %p156
        %p509 = pneg %p153
        %s510 = sand.u32 %s31, 1
        %s511 = scalar_lea.sflag [#allocation8], %s510
        %s512 = sand.u32 %s169, 1
        %s513 = smul.addr %s512, 32
        %s514 = scalar_lea.vmem [#allocation9], %s513
        %p515 = pneg %p182
        %p516 = pneg %p179
        %s517 = sand.u32 %s195, 1
        %s518 = scalar_lea.sflag [#allocation11], %s517
        %s519 = sand.u32 %s195, 1
        %s520 = smul.addr %s519, 32
        %s521 = scalar_lea.vmem [#allocation10], %s520
        %p522 = pneg %p208
        %p523 = pneg %p205
        %s524 = smul.u32 8, %s31
        %p525 = scmp.lt.s32.totalorder %s524, 15
        %s526 = scalar_select %p525, %s524, 15
        %s527 = smul.addr %s526, 4
        %s528 = scalar_lea.vmem %s7, %s527
        %p529 = pneg %p234
        %p530 = pneg %p231
        %p531 = pneg %p260
        %p532 = pneg %p257
        %p533 = scmp.lt.s32.totalorder %s31, 1
        %s534 = scalar_select %p533, %s31, 1
        %s535 = smul.addr %s534, 8
        %s536 = scalar_lea.vmem %s8, %s535
        %s537 = smul.u32 8, %s31
        %p538 = scmp.lt.s32.totalorder %s537, 15
        %s539 = scalar_select %p538, %s537, 15
        %s540 = smul.addr %s539, 4
        %s541 = scalar_lea.vmem %s3, %s540
        %s542 = smul.u32 8, %s31
        %s543 = smul.u32 8, %s31
        %s544 = smul.u32 8, %s31
        %s545 = smul.u32 8, %s31
        %s546 = smul.u32 8, %s31
        %p547 = scmp.lt.s32.totalorder %s546, 15
        %s548 = scalar_select %p547, %s546, 15
        %s549 = smul.addr %s548, 4
        %s550 = scalar_lea.vmem %s7, %s549
        %s551 = smul.u32 8, %s31
        %p552 = scmp.lt.s32.totalorder %s31, 1
        %s553 = scalar_select %p552, %s31, 1
        %s554 = smul.addr %s553, 8
        %s555 = scalar_lea.vmem %s8, %s554
        %v556 = vld [vmem:[%s425] sm:$0xff]
        %v557 = vld [vmem:[%s434] sm:$0xff]
        %v558 = vld [vmem:[%s443] sm:$0xff]
        %v559 = vld [vmem:[%s550] sm:$0x1]
        %v560 = vld [vmem:[%s550 + $0x4] sm:$0x1]
        %v561 = vld [vmem:[%s550 + $0x8] sm:$0x1]
        %v562 = vld [vmem:[%s550 + $0xc] sm:$0x1]
        %v563 = vld [vmem:[%s550 + $0x10] sm:$0x1]
        %v564 = vld [vmem:[%s550 + $0x14] sm:$0x1]
        %v565 = vld [vmem:[%s550 + $0x18] sm:$0x1]
        %v566 = vld [vmem:[%s550 + $0x1c] sm:$0x1]
        %v567 = vld [vmem:[%s550 + $0x1] sm:$0x1]
        %v568 = vld [vmem:[%s550 + $0x5] sm:$0x1]
        %v569 = vld [vmem:[%s550 + $0x9] sm:$0x1]
        %v570 = vld [vmem:[%s550 + $0xd] sm:$0x1]
        %v571 = vld [vmem:[%s550 + $0x11] sm:$0x1]
        %v572 = vld [vmem:[%s550 + $0x15] sm:$0x1]
        %v573 = vld [vmem:[%s550 + $0x19] sm:$0x1]
        %v574 = vld [vmem:[%s550 + $0x1d] sm:$0x1]
        %v575 = vld [vmem:[%s550 + $0x2] sm:$0x1]
        %v576 = vld [vmem:[%s550 + $0x6] sm:$0x1]
        %v577 = vld [vmem:[%s550 + $0xa] sm:$0x1]
        %v578 = vld [vmem:[%s550 + $0xe] sm:$0x1]
        %v579 = vld [vmem:[%s550 + $0x12] sm:$0x1]
        %v580 = vld [vmem:[%s550 + $0x16] sm:$0x1]
        %v581 = vld [vmem:[%s550 + $0x1a] sm:$0x1]
        %v582 = vld [vmem:[%s550 + $0x1e] sm:$0x1]
        %v583 = vld [vmem:[%s550 + $0x3] sm:$0x1]
        %v584 = vld [vmem:[%s550 + $0x7] sm:$0x1]
        %v585 = vld [vmem:[%s550 + $0xb] sm:$0x1]
        %v586 = vld [vmem:[%s550 + $0xf] sm:$0x1]
        %v587 = vld [vmem:[%s550 + $0x13] sm:$0x1]
        %v588 = vld [vmem:[%s550 + $0x17] sm:$0x1]
        %v589 = vld [vmem:[%s550 + $0x1b] sm:$0x1]
        %v590 = vld [vmem:[%s550 + $0x1f] sm:$0x1]
        %v591 = vmax.f32 %v559, %v567
        %v592 = vmax.f32 %v560, %v568
        %v593 = vmax.f32 %v561, %v569
        %v594 = vmax.f32 %v562, %v570
        %v595 = vmax.f32 %v563, %v571
        %v596 = vmax.f32 %v564, %v572
        %v597 = vmax.f32 %v565, %v573
        %v598 = vmax.f32 %v566, %v574
        %v599 = vmax.f32 %v591, %v575
        %v600 = vmax.f32 %v592, %v576
        %v601 = vmax.f32 %v593, %v577
        %v602 = vmax.f32 %v594, %v578
        %v603 = vmax.f32 %v595, %v579
        %v604 = vmax.f32 %v596, %v580
        %v605 = vmax.f32 %v597, %v581
        %v606 = vmax.f32 %v598, %v582
        %v607 = vmax.f32 %v599, %v583
        %v608 = vmax.f32 %v600, %v584
        %v609 = vmax.f32 %v601, %v585
        %v610 = vmax.f32 %v602, %v586
        %v611 = vmax.f32 %v603, %v587
        %v612 = vmax.f32 %v604, %v588
        %v613 = vmax.f32 %v605, %v589
        %v614 = vmax.f32 %v606, %v590
        %v615 = vsub.f32 %v559, %v607
        %v616 = vsub.f32 %v560, %v608
        %v617 = vsub.f32 %v561, %v609
        %v618 = vsub.f32 %v562, %v610
        %v619 = vsub.f32 %v563, %v611
        %v620 = vsub.f32 %v564, %v612
        %v621 = vsub.f32 %v565, %v613
        %v622 = vsub.f32 %v566, %v614
        %v623 = vmul.f32 %v615, 1.442695
        %v624 = vpow.pop %v623
        %v625 = vmul.f32 %v616, 1.442695
        %v626 = vpow.pop %v625
        %v627 = vmul.f32 %v617, 1.442695
        %v628 = vpow.pop %v627
        %v629 = vmul.f32 %v618, 1.442695
        %v630 = vpow.pop %v629
        %v631 = vmul.f32 %v619, 1.442695
        %v632 = vpow.pop %v631
        %v633 = vmul.f32 %v620, 1.442695
        %v634 = vpow.pop %v633
        %v635 = vmul.f32 %v621, 1.442695
        %v636 = vpow.pop %v635
        %v637 = vmul.f32 %v622, 1.442695
        %v638 = vpow.pop %v637
        %v639 = vsub.f32 %v567, %v607
        %v640 = vsub.f32 %v568, %v608
        %v641 = vsub.f32 %v569, %v609
        %v642 = vsub.f32 %v570, %v610
        %v643 = vsub.f32 %v571, %v611
        %v644 = vsub.f32 %v572, %v612
        %v645 = vsub.f32 %v573, %v613
        %v646 = vsub.f32 %v574, %v614
        %v647 = vmul.f32 %v639, 1.442695
        %v648 = vpow.pop %v647
        %v649 = vmul.f32 %v640, 1.442695
        %v650 = vpow.pop %v649
        %v651 = vmul.f32 %v641, 1.442695
        %v652 = vpow.pop %v651
        %v653 = vmul.f32 %v642, 1.442695
        %v654 = vpow.pop %v653
        %v655 = vmul.f32 %v643, 1.442695
        %v656 = vpow.pop %v655
        %v657 = vmul.f32 %v644, 1.442695
        %v658 = vpow.pop %v657
        %v659 = vmul.f32 %v645, 1.442695
        %v660 = vpow.pop %v659
        %v661 = vmul.f32 %v646, 1.442695
        %v662 = vpow.pop %v661
        %v663 = vadd.f32 %v624, %v648
        %v664 = vadd.f32 %v626, %v650
        %v665 = vadd.f32 %v628, %v652
        %v666 = vadd.f32 %v630, %v654
        %v667 = vadd.f32 %v632, %v656
        %v668 = vadd.f32 %v634, %v658
        %v669 = vadd.f32 %v636, %v660
        %v670 = vadd.f32 %v638, %v662
        %v671 = vsub.f32 %v575, %v607
        %v672 = vsub.f32 %v576, %v608
        %v673 = vsub.f32 %v577, %v609
        %v674 = vsub.f32 %v578, %v610
        %v675 = vsub.f32 %v579, %v611
        %v676 = vsub.f32 %v580, %v612
        %v677 = vsub.f32 %v581, %v613
        %v678 = vsub.f32 %v582, %v614
        %v679 = vmul.f32 %v671, 1.442695
        %v680 = vpow.pop %v679
        %v681 = vmul.f32 %v672, 1.442695
        %v682 = vpow.pop %v681
        %v683 = vmul.f32 %v673, 1.442695
        %v684 = vpow.pop %v683
        %v685 = vmul.f32 %v674, 1.442695
        %v686 = vpow.pop %v685
        %v687 = vmul.f32 %v675, 1.442695
        %v688 = vpow.pop %v687
        %v689 = vmul.f32 %v676, 1.442695
        %v690 = vpow.pop %v689
        %v691 = vmul.f32 %v677, 1.442695
        %v692 = vpow.pop %v691
        %v693 = vmul.f32 %v678, 1.442695
        %v694 = vpow.pop %v693
        %v695 = vadd.f32 %v663, %v680
        %v696 = vadd.f32 %v664, %v682
        %v697 = vadd.f32 %v665, %v684
        %v698 = vadd.f32 %v666, %v686
        %v699 = vadd.f32 %v667, %v688
        %v700 = vadd.f32 %v668, %v690
        %v701 = vadd.f32 %v669, %v692
        %v702 = vadd.f32 %v670, %v694
        %v703 = vsub.f32 %v583, %v607
        %v704 = vsub.f32 %v584, %v608
        %v705 = vsub.f32 %v585, %v609
        %v706 = vsub.f32 %v586, %v610
        %v707 = vsub.f32 %v587, %v611
        %v708 = vsub.f32 %v588, %v612
        %v709 = vsub.f32 %v589, %v613
        %v710 = vsub.f32 %v590, %v614
        %v711 = vmul.f32 %v703, 1.442695
        %v712 = vpow.pop %v711
        %v713 = vmul.f32 %v704, 1.442695
        %v714 = vpow.pop %v713
        %v715 = vmul.f32 %v705, 1.442695
        %v716 = vpow.pop %v715
        %v717 = vmul.f32 %v706, 1.442695
        %v718 = vpow.pop %v717
        %v719 = vmul.f32 %v707, 1.442695
        %v720 = vpow.pop %v719
        %v721 = vmul.f32 %v708, 1.442695
        %v722 = vpow.pop %v721
        %v723 = vmul.f32 %v709, 1.442695
        %v724 = vpow.pop %v723
        %v725 = vmul.f32 %v710, 1.442695
        %v726 = vpow.pop %v725
        %v727 = vadd.f32 %v695, %v712
        %v728 = vadd.f32 %v696, %v714
        %v729 = vadd.f32 %v697, %v716
        %v730 = vadd.f32 %v698, %v718
        %v731 = vadd.f32 %v699, %v720
        %v732 = vadd.f32 %v700, %v722
        %v733 = vadd.f32 %v701, %v724
        %v734 = vadd.f32 %v702, %v726
        %v735 = vlog2.pop %v727
        %v736 = vmul.f32 %v735, 0.6931472
        %v737 = vlog2.pop %v728
        %v738 = vmul.f32 %v737, 0.6931472
        %v739 = vlog2.pop %v729
        %v740 = vmul.f32 %v739, 0.6931472
        %v741 = vlog2.pop %v730
        %v742 = vmul.f32 %v741, 0.6931472
        %v743 = vlog2.pop %v731
        %v744 = vmul.f32 %v743, 0.6931472
        %v745 = vlog2.pop %v732
        %v746 = vmul.f32 %v745, 0.6931472
        %v747 = vlog2.pop %v733
        %v748 = vmul.f32 %v747, 0.6931472
        %v749 = vlog2.pop %v734
        %v750 = vmul.f32 %v749, 0.6931472
        %v751 = vadd.f32 %v607, %v736
        %v752 = vadd.f32 %v608, %v738
        %v753 = vadd.f32 %v609, %v740
        %v754 = vadd.f32 %v610, %v742
        %v755 = vadd.f32 %v611, %v744
        %v756 = vadd.f32 %v612, %v746
        %v757 = vadd.f32 %v613, %v748
        %v758 = vadd.f32 %v614, %v750
        %v759 = vld [vmem:[%s541] sm:$0x1]
        %v760 = vld [vmem:[%s541 + $0x4] sm:$0x1]
        %v761 = vld [vmem:[%s541 + $0x8] sm:$0x1]
        %v762 = vld [vmem:[%s541 + $0xc] sm:$0x1]
        %v763 = vld [vmem:[%s541 + $0x10] sm:$0x1]
        %v764 = vld [vmem:[%s541 + $0x14] sm:$0x1]
        %v765 = vld [vmem:[%s541 + $0x18] sm:$0x1]
        %v766 = vld [vmem:[%s541 + $0x1c] sm:$0x1]
        %v768 = vrot.slane %v556, 1
        %v769 = vrot.slane %v556, 2
        %v770 = vrot.slane %v556, 3
        %v771 = vrot.slane %v556, 4
        %v772 = vrot.slane %v556, 5
        %v773 = vrot.slane %v556, 6
        %v774 = vrot.slane %v556, 7
        %v783 = vsub.f32 %v759, %v556
        %v784 = vsub.f32 %v760, %v768
        %v785 = vsub.f32 %v761, %v769
        %v786 = vsub.f32 %v762, %v770
        %v787 = vsub.f32 %v763, %v771
        %v788 = vsub.f32 %v764, %v772
        %v789 = vsub.f32 %v765, %v773
        %v790 = vsub.f32 %v766, %v774
        %v792 = vrot.slane %v558, 1
        %v793 = vrot.slane %v558, 2
        %v794 = vrot.slane %v558, 3
        %v795 = vrot.slane %v558, 4
        %v796 = vrot.slane %v558, 5
        %v797 = vrot.slane %v558, 6
        %v798 = vrot.slane %v558, 7
        %v807 = vmul.f32 %v783, %v558
        %v808 = vmul.f32 %v784, %v792
        %v809 = vmul.f32 %v785, %v793
        %v810 = vmul.f32 %v786, %v794
        %v811 = vmul.f32 %v787, %v795
        %v812 = vmul.f32 %v788, %v796
        %v813 = vmul.f32 %v789, %v797
        %v814 = vmul.f32 %v790, %v798
        %v815 = vld [vmem:[%s452] sm:$0x1]
        %v816 = vld [vmem:[%s452 + $0x4] sm:$0x1]
        %v817 = vld [vmem:[%s452 + $0x8] sm:$0x1]
        %v818 = vld [vmem:[%s452 + $0xc] sm:$0x1]
        %v819 = vld [vmem:[%s452 + $0x10] sm:$0x1]
        %v820 = vld [vmem:[%s452 + $0x14] sm:$0x1]
        %v821 = vld [vmem:[%s452 + $0x18] sm:$0x1]
        %v822 = vld [vmem:[%s452 + $0x1c] sm:$0x1]
        %v824 = vrot.slane %v557, 1
        %v825 = vrot.slane %v557, 2
        %v826 = vrot.slane %v557, 3
        %v827 = vrot.slane %v557, 4
        %v828 = vrot.slane %v557, 5
        %v829 = vrot.slane %v557, 6
        %v830 = vrot.slane %v557, 7
        %v839 = vsub.f32 %v815, %v557
        %v840 = vsub.f32 %v816, %v824
        %v841 = vsub.f32 %v817, %v825
        %v842 = vsub.f32 %v818, %v826
        %v843 = vsub.f32 %v819, %v827
        %v844 = vsub.f32 %v820, %v828
        %v845 = vsub.f32 %v821, %v829
        %v846 = vsub.f32 %v822, %v830
        %v847 = vmul.f32 %v839, %v558
        %v848 = vmul.f32 %v840, %v792
        %v849 = vmul.f32 %v841, %v793
        %v850 = vmul.f32 %v842, %v794
        %v851 = vmul.f32 %v843, %v795
        %v852 = vmul.f32 %v844, %v796
        %v853 = vmul.f32 %v845, %v797
        %v854 = vmul.f32 %v846, %v798
        %v855 = vld [vmem:[%s461] sm:$0x1]
        %v856 = vld [vmem:[%s461 + $0x4] sm:$0x1]
        %v857 = vld [vmem:[%s461 + $0x8] sm:$0x1]
        %v858 = vld [vmem:[%s461 + $0xc] sm:$0x1]
        %v859 = vld [vmem:[%s461 + $0x10] sm:$0x1]
        %v860 = vld [vmem:[%s461 + $0x14] sm:$0x1]
        %v861 = vld [vmem:[%s461 + $0x18] sm:$0x1]
        %v862 = vld [vmem:[%s461 + $0x1c] sm:$0x1]
        %v863 = vld [vmem:[%s470] sm:$0x1]
        %v864 = vld [vmem:[%s470 + $0x4] sm:$0x1]
        %v865 = vld [vmem:[%s470 + $0x8] sm:$0x1]
        %v866 = vld [vmem:[%s470 + $0xc] sm:$0x1]
        %v867 = vld [vmem:[%s470 + $0x10] sm:$0x1]
        %v868 = vld [vmem:[%s470 + $0x14] sm:$0x1]
        %v869 = vld [vmem:[%s470 + $0x18] sm:$0x1]
        %v870 = vld [vmem:[%s470 + $0x1c] sm:$0x1]
        %v871 = vmul.f32 %v855, %v863
        %v872 = vmul.f32 %v856, %v864
        %v873 = vmul.f32 %v857, %v865
        %v874 = vmul.f32 %v858, %v866
        %v875 = vmul.f32 %v859, %v867
        %v876 = vmul.f32 %v860, %v868
        %v877 = vmul.f32 %v861, %v869
        %v878 = vmul.f32 %v862, %v870
        %v879 = vmul.f32 %v807, %v807
        %v880 = vmul.f32 %v808, %v808
        %v881 = vmul.f32 %v809, %v809
        %v882 = vmul.f32 %v810, %v810
        %v883 = vmul.f32 %v811, %v811
        %v884 = vmul.f32 %v812, %v812
        %v885 = vmul.f32 %v813, %v813
        %v886 = vmul.f32 %v814, %v814
        %v887 = vmul.f32 %v879, %v863
        %v888 = vmul.f32 %v880, %v864
        %v889 = vmul.f32 %v881, %v865
        %v890 = vmul.f32 %v882, %v866
        %v891 = vmul.f32 %v883, %v867
        %v892 = vmul.f32 %v884, %v868
        %v893 = vmul.f32 %v885, %v869
        %v894 = vmul.f32 %v886, %v870
        %v895 = vmul.f32 %v847, %v847
        %v896 = vmul.f32 %v848, %v848
        %v897 = vmul.f32 %v849, %v849
        %v898 = vmul.f32 %v850, %v850
        %v899 = vmul.f32 %v851, %v851
        %v900 = vmul.f32 %v852, %v852
        %v901 = vmul.f32 %v853, %v853
        %v902 = vmul.f32 %v854, %v854
        %v903 = vmul.f32 %v895, %v855
        %v904 = vmul.f32 %v896, %v856
        %v905 = vmul.f32 %v897, %v857
        %v906 = vmul.f32 %v898, %v858
        %v907 = vmul.f32 %v899, %v859
        %v908 = vmul.f32 %v900, %v860
        %v909 = vmul.f32 %v901, %v861
        %v910 = vmul.f32 %v902, %v862
        %v911 = vadd.f32 %v887, %v903
        %v912 = vadd.f32 %v888, %v904
        %v913 = vadd.f32 %v889, %v905
        %v914 = vadd.f32 %v890, %v906
        %v915 = vadd.f32 %v891, %v907
        %v916 = vadd.f32 %v892, %v908
        %v917 = vadd.f32 %v893, %v909
        %v918 = vadd.f32 %v894, %v910
        %v919 = vrcp.pop %v871
        %v920 = vmul.f32 %v911, %v919
        %v921 = vrcp.pop %v872
        %v922 = vmul.f32 %v912, %v921
        %v923 = vrcp.pop %v873
        %v924 = vmul.f32 %v913, %v923
        %v925 = vrcp.pop %v874
        %v926 = vmul.f32 %v914, %v925
        %v927 = vrcp.pop %v875
        %v928 = vmul.f32 %v915, %v927
        %v929 = vrcp.pop %v876
        %v930 = vmul.f32 %v916, %v929
        %v931 = vrcp.pop %v877
        %v932 = vmul.f32 %v917, %v931
        %v933 = vrcp.pop %v878
        %v934 = vmul.f32 %v918, %v933
        %v935 = vlog2.pop %v871
        %v936 = vmul.f32 %v935, 0.6931472
        %v937 = vlog2.pop %v872
        %v938 = vmul.f32 %v937, 0.6931472
        %v939 = vlog2.pop %v873
        %v940 = vmul.f32 %v939, 0.6931472
        %v941 = vlog2.pop %v874
        %v942 = vmul.f32 %v941, 0.6931472
        %v943 = vlog2.pop %v875
        %v944 = vmul.f32 %v943, 0.6931472
        %v945 = vlog2.pop %v876
        %v946 = vmul.f32 %v945, 0.6931472
        %v947 = vlog2.pop %v877
        %v948 = vmul.f32 %v947, 0.6931472
        %v949 = vlog2.pop %v878
        %v950 = vmul.f32 %v949, 0.6931472
        %v951 = vadd.f32 %v936, %v920
        %v952 = vadd.f32 %v938, %v922
        %v953 = vadd.f32 %v940, %v924
        %v954 = vadd.f32 %v942, %v926
        %v955 = vadd.f32 %v944, %v928
        %v956 = vadd.f32 %v946, %v930
        %v957 = vadd.f32 %v948, %v932
        %v958 = vadd.f32 %v950, %v934
        %v967 = vrot.slane %v952, 7
        %vm968 = vcmask 1041409
        %v969 = vsel %vm968, %v967, %v951
        %v970 = vrot.slane %v953, 6
        %vm971 = vcmask 1042434
        %v972 = vsel %vm971, %v970, %v969
        %v973 = vrot.slane %v954, 5
        %vm974 = vcmask 1043459
        %v975 = vsel %vm974, %v973, %v972
        %v976 = vrot.slane %v955, 4
        %vm977 = vcmask 1044484
        %v978 = vsel %vm977, %v976, %v975
        %v979 = vrot.slane %v956, 3
        %vm980 = vcmask 1045509
        %v981 = vsel %vm980, %v979, %v978
        %v982 = vrot.slane %v957, 2
        %vm983 = vcmask 1046534
        %v984 = vsel %vm983, %v982, %v981
        %v985 = vrot.slane %v958, 1
        %vm986 = vcmask 1047559
        %v987 = vsel %vm986, %v985, %v984
        %vm989 = vcmask 130048
        %v990 = vsel %vm989, %v987, 0.0
        %991 = vadd.xlane.f32.xlu0 %v990
        %v992 = vpop.xlane.xlu0 %991
        %v993 = vadd.f32 %v992, 29.406033
        %v994 = vmul.f32 %v993, -0.5
        %v995 = vsub.f32 %v559, %v751
        %v996 = vsub.f32 %v560, %v752
        %v997 = vsub.f32 %v561, %v753
        %v998 = vsub.f32 %v562, %v754
        %v999 = vsub.f32 %v563, %v755
        %v1000 = vsub.f32 %v564, %v756
        %v1001 = vsub.f32 %v565, %v757
        %v1002 = vsub.f32 %v566, %v758
        %v1011 = vrot.slane %v996, 7
        %v1012 = vsel %vm968, %v1011, %v995
        %v1013 = vrot.slane %v997, 6
        %v1014 = vsel %vm971, %v1013, %v1012
        %v1015 = vrot.slane %v998, 5
        %v1016 = vsel %vm974, %v1015, %v1014
        %v1017 = vrot.slane %v999, 4
        %v1018 = vsel %vm977, %v1017, %v1016
        %v1019 = vrot.slane %v1000, 3
        %v1020 = vsel %vm980, %v1019, %v1018
        %v1021 = vrot.slane %v1001, 2
        %v1022 = vsel %vm983, %v1021, %v1020
        %v1023 = vrot.slane %v1002, 1
        %v1024 = vsel %vm986, %v1023, %v1022
        %v1026 = vadd.f32 %v994, %v1024
        %v1027 = vld [vmem:[%s541 + $0x1] sm:$0x1]
        %v1028 = vld [vmem:[%s541 + $0x5] sm:$0x1]
        %v1029 = vld [vmem:[%s541 + $0x9] sm:$0x1]
        %v1030 = vld [vmem:[%s541 + $0xd] sm:$0x1]
        %v1031 = vld [vmem:[%s541 + $0x11] sm:$0x1]
        %v1032 = vld [vmem:[%s541 + $0x15] sm:$0x1]
        %v1033 = vld [vmem:[%s541 + $0x19] sm:$0x1]
        %v1034 = vld [vmem:[%s541 + $0x1d] sm:$0x1]
        %v1035 = vsub.f32 %v1027, %v556
        %v1036 = vsub.f32 %v1028, %v768
        %v1037 = vsub.f32 %v1029, %v769
        %v1038 = vsub.f32 %v1030, %v770
        %v1039 = vsub.f32 %v1031, %v771
        %v1040 = vsub.f32 %v1032, %v772
        %v1041 = vsub.f32 %v1033, %v773
        %v1042 = vsub.f32 %v1034, %v774
        %v1043 = vmul.f32 %v1035, %v558
        %v1044 = vmul.f32 %v1036, %v792
        %v1045 = vmul.f32 %v1037, %v793
        %v1046 = vmul.f32 %v1038, %v794
        %v1047 = vmul.f32 %v1039, %v795
        %v1048 = vmul.f32 %v1040, %v796
        %v1049 = vmul.f32 %v1041, %v797
        %v1050 = vmul.f32 %v1042, %v798
        %v1051 = vld [vmem:[%s452 + $0x1] sm:$0x1]
        %v1052 = vld [vmem:[%s452 + $0x5] sm:$0x1]
        %v1053 = vld [vmem:[%s452 + $0x9] sm:$0x1]
        %v1054 = vld [vmem:[%s452 + $0xd] sm:$0x1]
        %v1055 = vld [vmem:[%s452 + $0x11] sm:$0x1]
        %v1056 = vld [vmem:[%s452 + $0x15] sm:$0x1]
        %v1057 = vld [vmem:[%s452 + $0x19] sm:$0x1]
        %v1058 = vld [vmem:[%s452 + $0x1d] sm:$0x1]
        %v1059 = vsub.f32 %v1051, %v557
        %v1060 = vsub.f32 %v1052, %v824
        %v1061 = vsub.f32 %v1053, %v825
        %v1062 = vsub.f32 %v1054, %v826
        %v1063 = vsub.f32 %v1055, %v827
        %v1064 = vsub.f32 %v1056, %v828
        %v1065 = vsub.f32 %v1057, %v829
        %v1066 = vsub.f32 %v1058, %v830
        %v1067 = vmul.f32 %v1059, %v558
        %v1068 = vmul.f32 %v1060, %v792
        %v1069 = vmul.f32 %v1061, %v793
        %v1070 = vmul.f32 %v1062, %v794
        %v1071 = vmul.f32 %v1063, %v795
        %v1072 = vmul.f32 %v1064, %v796
        %v1073 = vmul.f32 %v1065, %v797
        %v1074 = vmul.f32 %v1066, %v798
        %v1075 = vld [vmem:[%s461 + $0x1] sm:$0x1]
        %v1076 = vld [vmem:[%s461 + $0x5] sm:$0x1]
        %v1077 = vld [vmem:[%s461 + $0x9] sm:$0x1]
        %v1078 = vld [vmem:[%s461 + $0xd] sm:$0x1]
        %v1079 = vld [vmem:[%s461 + $0x11] sm:$0x1]
        %v1080 = vld [vmem:[%s461 + $0x15] sm:$0x1]
        %v1081 = vld [vmem:[%s461 + $0x19] sm:$0x1]
        %v1082 = vld [vmem:[%s461 + $0x1d] sm:$0x1]
        %v1083 = vld [vmem:[%s470 + $0x1] sm:$0x1]
        %v1084 = vld [vmem:[%s470 + $0x5] sm:$0x1]
        %v1085 = vld [vmem:[%s470 + $0x9] sm:$0x1]
        %v1086 = vld [vmem:[%s470 + $0xd] sm:$0x1]
        %v1087 = vld [vmem:[%s470 + $0x11] sm:$0x1]
        %v1088 = vld [vmem:[%s470 + $0x15] sm:$0x1]
        %v1089 = vld [vmem:[%s470 + $0x19] sm:$0x1]
        %v1090 = vld [vmem:[%s470 + $0x1d] sm:$0x1]
        %v1091 = vmul.f32 %v1075, %v1083
        %v1092 = vmul.f32 %v1076, %v1084
        %v1093 = vmul.f32 %v1077, %v1085
        %v1094 = vmul.f32 %v1078, %v1086
        %v1095 = vmul.f32 %v1079, %v1087
        %v1096 = vmul.f32 %v1080, %v1088
        %v1097 = vmul.f32 %v1081, %v1089
        %v1098 = vmul.f32 %v1082, %v1090
        %v1099 = vmul.f32 %v1043, %v1043
        %v1100 = vmul.f32 %v1044, %v1044
        %v1101 = vmul.f32 %v1045, %v1045
        %v1102 = vmul.f32 %v1046, %v1046
        %v1103 = vmul.f32 %v1047, %v1047
        %v1104 = vmul.f32 %v1048, %v1048
        %v1105 = vmul.f32 %v1049, %v1049
        %v1106 = vmul.f32 %v1050, %v1050
        %v1107 = vmul.f32 %v1099, %v1083
        %v1108 = vmul.f32 %v1100, %v1084
        %v1109 = vmul.f32 %v1101, %v1085
        %v1110 = vmul.f32 %v1102, %v1086
        %v1111 = vmul.f32 %v1103, %v1087
        %v1112 = vmul.f32 %v1104, %v1088
        %v1113 = vmul.f32 %v1105, %v1089
        %v1114 = vmul.f32 %v1106, %v1090
        %v1115 = vmul.f32 %v1067, %v1067
        %v1116 = vmul.f32 %v1068, %v1068
        %v1117 = vmul.f32 %v1069, %v1069
        %v1118 = vmul.f32 %v1070, %v1070
        %v1119 = vmul.f32 %v1071, %v1071
        %v1120 = vmul.f32 %v1072, %v1072
        %v1121 = vmul.f32 %v1073, %v1073
        %v1122 = vmul.f32 %v1074, %v1074
        %v1123 = vmul.f32 %v1115, %v1075
        %v1124 = vmul.f32 %v1116, %v1076
        %v1125 = vmul.f32 %v1117, %v1077
        %v1126 = vmul.f32 %v1118, %v1078
        %v1127 = vmul.f32 %v1119, %v1079
        %v1128 = vmul.f32 %v1120, %v1080
        %v1129 = vmul.f32 %v1121, %v1081
        %v1130 = vmul.f32 %v1122, %v1082
        %v1131 = vadd.f32 %v1107, %v1123
        %v1132 = vadd.f32 %v1108, %v1124
        %v1133 = vadd.f32 %v1109, %v1125
        %v1134 = vadd.f32 %v1110, %v1126
        %v1135 = vadd.f32 %v1111, %v1127
        %v1136 = vadd.f32 %v1112, %v1128
        %v1137 = vadd.f32 %v1113, %v1129
        %v1138 = vadd.f32 %v1114, %v1130
        %v1139 = vrcp.pop %v1091
        %v1140 = vmul.f32 %v1131, %v1139
        %v1141 = vrcp.pop %v1092
        %v1142 = vmul.f32 %v1132, %v1141
        %v1143 = vrcp.pop %v1093
        %v1144 = vmul.f32 %v1133, %v1143
        %v1145 = vrcp.pop %v1094
        %v1146 = vmul.f32 %v1134, %v1145
        %v1147 = vrcp.pop %v1095
        %v1148 = vmul.f32 %v1135, %v1147
        %v1149 = vrcp.pop %v1096
        %v1150 = vmul.f32 %v1136, %v1149
        %v1151 = vrcp.pop %v1097
        %v1152 = vmul.f32 %v1137, %v1151
        %v1153 = vrcp.pop %v1098
        %v1154 = vmul.f32 %v1138, %v1153
        %v1155 = vlog2.pop %v1091
        %v1156 = vmul.f32 %v1155, 0.6931472
        %v1157 = vlog2.pop %v1092
        %v1158 = vmul.f32 %v1157, 0.6931472
        %v1159 = vlog2.pop %v1093
        %v1160 = vmul.f32 %v1159, 0.6931472
        %v1161 = vlog2.pop %v1094
        %v1162 = vmul.f32 %v1161, 0.6931472
        %v1163 = vlog2.pop %v1095
        %v1164 = vmul.f32 %v1163, 0.6931472
        %v1165 = vlog2.pop %v1096
        %v1166 = vmul.f32 %v1165, 0.6931472
        %v1167 = vlog2.pop %v1097
        %v1168 = vmul.f32 %v1167, 0.6931472
        %v1169 = vlog2.pop %v1098
        %v1170 = vmul.f32 %v1169, 0.6931472
        %v1171 = vadd.f32 %v1156, %v1140
        %v1172 = vadd.f32 %v1158, %v1142
        %v1173 = vadd.f32 %v1160, %v1144
        %v1174 = vadd.f32 %v1162, %v1146
        %v1175 = vadd.f32 %v1164, %v1148
        %v1176 = vadd.f32 %v1166, %v1150
        %v1177 = vadd.f32 %v1168, %v1152
        %v1178 = vadd.f32 %v1170, %v1154
        %v1187 = vrot.slane %v1172, 7
        %v1188 = vsel %vm968, %v1187, %v1171
        %v1189 = vrot.slane %v1173, 6
        %v1190 = vsel %vm971, %v1189, %v1188
        %v1191 = vrot.slane %v1174, 5
        %v1192 = vsel %vm974, %v1191, %v1190
        %v1193 = vrot.slane %v1175, 4
        %v1194 = vsel %vm977, %v1193, %v1192
        %v1195 = vrot.slane %v1176, 3
        %v1196 = vsel %vm980, %v1195, %v1194
        %v1197 = vrot.slane %v1177, 2
        %v1198 = vsel %vm983, %v1197, %v1196
        %v1199 = vrot.slane %v1178, 1
        %v1200 = vsel %vm986, %v1199, %v1198
        %v1202 = vsel %vm989, %v1200, 0.0
        %1203 = vadd.xlane.f32.xlu0 %v1202
        %v1204 = vpop.xlane.xlu0 %1203
        %v1205 = vadd.f32 %v1204, 29.406033
        %v1206 = vmul.f32 %v1205, -0.5
        %v1207 = vsub.f32 %v567, %v751
        %v1208 = vsub.f32 %v568, %v752
        %v1209 = vsub.f32 %v569, %v753
        %v1210 = vsub.f32 %v570, %v754
        %v1211 = vsub.f32 %v571, %v755
        %v1212 = vsub.f32 %v572, %v756
        %v1213 = vsub.f32 %v573, %v757
        %v1214 = vsub.f32 %v574, %v758
        %v1223 = vrot.slane %v1208, 7
        %v1224 = vsel %vm968, %v1223, %v1207
        %v1225 = vrot.slane %v1209, 6
        %v1226 = vsel %vm971, %v1225, %v1224
        %v1227 = vrot.slane %v1210, 5
        %v1228 = vsel %vm974, %v1227, %v1226
        %v1229 = vrot.slane %v1211, 4
        %v1230 = vsel %vm977, %v1229, %v1228
        %v1231 = vrot.slane %v1212, 3
        %v1232 = vsel %vm980, %v1231, %v1230
        %v1233 = vrot.slane %v1213, 2
        %v1234 = vsel %vm983, %v1233, %v1232
        %v1235 = vrot.slane %v1214, 1
        %v1236 = vsel %vm986, %v1235, %v1234
        %v1238 = vadd.f32 %v1206, %v1236
        %v1239 = vld [vmem:[%s541 + $0x2] sm:$0x1]
        %v1240 = vld [vmem:[%s541 + $0x6] sm:$0x1]
        %v1241 = vld [vmem:[%s541 + $0xa] sm:$0x1]
        %v1242 = vld [vmem:[%s541 + $0xe] sm:$0x1]
        %v1243 = vld [vmem:[%s541 + $0x12] sm:$0x1]
        %v1244 = vld [vmem:[%s541 + $0x16] sm:$0x1]
        %v1245 = vld [vmem:[%s541 + $0x1a] sm:$0x1]
        %v1246 = vld [vmem:[%s541 + $0x1e] sm:$0x1]
        %v1247 = vsub.f32 %v1239, %v556
        %v1248 = vsub.f32 %v1240, %v768
        %v1249 = vsub.f32 %v1241, %v769
        %v1250 = vsub.f32 %v1242, %v770
        %v1251 = vsub.f32 %v1243, %v771
        %v1252 = vsub.f32 %v1244, %v772
        %v1253 = vsub.f32 %v1245, %v773
        %v1254 = vsub.f32 %v1246, %v774
        %v1255 = vmul.f32 %v1247, %v558
        %v1256 = vmul.f32 %v1248, %v792
        %v1257 = vmul.f32 %v1249, %v793
        %v1258 = vmul.f32 %v1250, %v794
        %v1259 = vmul.f32 %v1251, %v795
        %v1260 = vmul.f32 %v1252, %v796
        %v1261 = vmul.f32 %v1253, %v797
        %v1262 = vmul.f32 %v1254, %v798
        %v1263 = vld [vmem:[%s452 + $0x2] sm:$0x1]
        %v1264 = vld [vmem:[%s452 + $0x6] sm:$0x1]
        %v1265 = vld [vmem:[%s452 + $0xa] sm:$0x1]
        %v1266 = vld [vmem:[%s452 + $0xe] sm:$0x1]
        %v1267 = vld [vmem:[%s452 + $0x12] sm:$0x1]
        %v1268 = vld [vmem:[%s452 + $0x16] sm:$0x1]
        %v1269 = vld [vmem:[%s452 + $0x1a] sm:$0x1]
        %v1270 = vld [vmem:[%s452 + $0x1e] sm:$0x1]
        %v1271 = vsub.f32 %v1263, %v557
        %v1272 = vsub.f32 %v1264, %v824
        %v1273 = vsub.f32 %v1265, %v825
        %v1274 = vsub.f32 %v1266, %v826
        %v1275 = vsub.f32 %v1267, %v827
        %v1276 = vsub.f32 %v1268, %v828
        %v1277 = vsub.f32 %v1269, %v829
        %v1278 = vsub.f32 %v1270, %v830
        %v1279 = vmul.f32 %v1271, %v558
        %v1280 = vmul.f32 %v1272, %v792
        %v1281 = vmul.f32 %v1273, %v793
        %v1282 = vmul.f32 %v1274, %v794
        %v1283 = vmul.f32 %v1275, %v795
        %v1284 = vmul.f32 %v1276, %v796
        %v1285 = vmul.f32 %v1277, %v797
        %v1286 = vmul.f32 %v1278, %v798
        %v1287 = vld [vmem:[%s461 + $0x2] sm:$0x1]
        %v1288 = vld [vmem:[%s461 + $0x6] sm:$0x1]
        %v1289 = vld [vmem:[%s461 + $0xa] sm:$0x1]
        %v1290 = vld [vmem:[%s461 + $0xe] sm:$0x1]
        %v1291 = vld [vmem:[%s461 + $0x12] sm:$0x1]
        %v1292 = vld [vmem:[%s461 + $0x16] sm:$0x1]
        %v1293 = vld [vmem:[%s461 + $0x1a] sm:$0x1]
        %v1294 = vld [vmem:[%s461 + $0x1e] sm:$0x1]
        %v1295 = vld [vmem:[%s470 + $0x2] sm:$0x1]
        %v1296 = vld [vmem:[%s470 + $0x6] sm:$0x1]
        %v1297 = vld [vmem:[%s470 + $0xa] sm:$0x1]
        %v1298 = vld [vmem:[%s470 + $0xe] sm:$0x1]
        %v1299 = vld [vmem:[%s470 + $0x12] sm:$0x1]
        %v1300 = vld [vmem:[%s470 + $0x16] sm:$0x1]
        %v1301 = vld [vmem:[%s470 + $0x1a] sm:$0x1]
        %v1302 = vld [vmem:[%s470 + $0x1e] sm:$0x1]
        %v1303 = vmul.f32 %v1287, %v1295
        %v1304 = vmul.f32 %v1288, %v1296
        %v1305 = vmul.f32 %v1289, %v1297
        %v1306 = vmul.f32 %v1290, %v1298
        %v1307 = vmul.f32 %v1291, %v1299
        %v1308 = vmul.f32 %v1292, %v1300
        %v1309 = vmul.f32 %v1293, %v1301
        %v1310 = vmul.f32 %v1294, %v1302
        %v1311 = vmul.f32 %v1255, %v1255
        %v1312 = vmul.f32 %v1256, %v1256
        %v1313 = vmul.f32 %v1257, %v1257
        %v1314 = vmul.f32 %v1258, %v1258
        %v1315 = vmul.f32 %v1259, %v1259
        %v1316 = vmul.f32 %v1260, %v1260
        %v1317 = vmul.f32 %v1261, %v1261
        %v1318 = vmul.f32 %v1262, %v1262
        %v1319 = vmul.f32 %v1311, %v1295
        %v1320 = vmul.f32 %v1312, %v1296
        %v1321 = vmul.f32 %v1313, %v1297
        %v1322 = vmul.f32 %v1314, %v1298
        %v1323 = vmul.f32 %v1315, %v1299
        %v1324 = vmul.f32 %v1316, %v1300
        %v1325 = vmul.f32 %v1317, %v1301
        %v1326 = vmul.f32 %v1318, %v1302
        %v1327 = vmul.f32 %v1279, %v1279
        %v1328 = vmul.f32 %v1280, %v1280
        %v1329 = vmul.f32 %v1281, %v1281
        %v1330 = vmul.f32 %v1282, %v1282
        %v1331 = vmul.f32 %v1283, %v1283
        %v1332 = vmul.f32 %v1284, %v1284
        %v1333 = vmul.f32 %v1285, %v1285
        %v1334 = vmul.f32 %v1286, %v1286
        %v1335 = vmul.f32 %v1327, %v1287
        %v1336 = vmul.f32 %v1328, %v1288
        %v1337 = vmul.f32 %v1329, %v1289
        %v1338 = vmul.f32 %v1330, %v1290
        %v1339 = vmul.f32 %v1331, %v1291
        %v1340 = vmul.f32 %v1332, %v1292
        %v1341 = vmul.f32 %v1333, %v1293
        %v1342 = vmul.f32 %v1334, %v1294
        %v1343 = vadd.f32 %v1319, %v1335
        %v1344 = vadd.f32 %v1320, %v1336
        %v1345 = vadd.f32 %v1321, %v1337
        %v1346 = vadd.f32 %v1322, %v1338
        %v1347 = vadd.f32 %v1323, %v1339
        %v1348 = vadd.f32 %v1324, %v1340
        %v1349 = vadd.f32 %v1325, %v1341
        %v1350 = vadd.f32 %v1326, %v1342
        %v1351 = vrcp.pop %v1303
        %v1352 = vmul.f32 %v1343, %v1351
        %v1353 = vrcp.pop %v1304
        %v1354 = vmul.f32 %v1344, %v1353
        %v1355 = vrcp.pop %v1305
        %v1356 = vmul.f32 %v1345, %v1355
        %v1357 = vrcp.pop %v1306
        %v1358 = vmul.f32 %v1346, %v1357
        %v1359 = vrcp.pop %v1307
        %v1360 = vmul.f32 %v1347, %v1359
        %v1361 = vrcp.pop %v1308
        %v1362 = vmul.f32 %v1348, %v1361
        %v1363 = vrcp.pop %v1309
        %v1364 = vmul.f32 %v1349, %v1363
        %v1365 = vrcp.pop %v1310
        %v1366 = vmul.f32 %v1350, %v1365
        %v1367 = vlog2.pop %v1303
        %v1368 = vmul.f32 %v1367, 0.6931472
        %v1369 = vlog2.pop %v1304
        %v1370 = vmul.f32 %v1369, 0.6931472
        %v1371 = vlog2.pop %v1305
        %v1372 = vmul.f32 %v1371, 0.6931472
        %v1373 = vlog2.pop %v1306
        %v1374 = vmul.f32 %v1373, 0.6931472
        %v1375 = vlog2.pop %v1307
        %v1376 = vmul.f32 %v1375, 0.6931472
        %v1377 = vlog2.pop %v1308
        %v1378 = vmul.f32 %v1377, 0.6931472
        %v1379 = vlog2.pop %v1309
        %v1380 = vmul.f32 %v1379, 0.6931472
        %v1381 = vlog2.pop %v1310
        %v1382 = vmul.f32 %v1381, 0.6931472
        %v1383 = vadd.f32 %v1368, %v1352
        %v1384 = vadd.f32 %v1370, %v1354
        %v1385 = vadd.f32 %v1372, %v1356
        %v1386 = vadd.f32 %v1374, %v1358
        %v1387 = vadd.f32 %v1376, %v1360
        %v1388 = vadd.f32 %v1378, %v1362
        %v1389 = vadd.f32 %v1380, %v1364
        %v1390 = vadd.f32 %v1382, %v1366
        %v1399 = vrot.slane %v1384, 7
        %v1400 = vsel %vm968, %v1399, %v1383
        %v1401 = vrot.slane %v1385, 6
        %v1402 = vsel %vm971, %v1401, %v1400
        %v1403 = vrot.slane %v1386, 5
        %v1404 = vsel %vm974, %v1403, %v1402
        %v1405 = vrot.slane %v1387, 4
        %v1406 = vsel %vm977, %v1405, %v1404
        %v1407 = vrot.slane %v1388, 3
        %v1408 = vsel %vm980, %v1407, %v1406
        %v1409 = vrot.slane %v1389, 2
        %v1410 = vsel %vm983, %v1409, %v1408
        %v1411 = vrot.slane %v1390, 1
        %v1412 = vsel %vm986, %v1411, %v1410
        %v1414 = vsel %vm989, %v1412, 0.0
        %1415 = vadd.xlane.f32.xlu0 %v1414
        %v1416 = vpop.xlane.xlu0 %1415
        %v1417 = vadd.f32 %v1416, 29.406033
        %v1418 = vmul.f32 %v1417, -0.5
        %v1419 = vsub.f32 %v575, %v751
        %v1420 = vsub.f32 %v576, %v752
        %v1421 = vsub.f32 %v577, %v753
        %v1422 = vsub.f32 %v578, %v754
        %v1423 = vsub.f32 %v579, %v755
        %v1424 = vsub.f32 %v580, %v756
        %v1425 = vsub.f32 %v581, %v757
        %v1426 = vsub.f32 %v582, %v758
        %v1435 = vrot.slane %v1420, 7
        %v1436 = vsel %vm968, %v1435, %v1419
        %v1437 = vrot.slane %v1421, 6
        %v1438 = vsel %vm971, %v1437, %v1436
        %v1439 = vrot.slane %v1422, 5
        %v1440 = vsel %vm974, %v1439, %v1438
        %v1441 = vrot.slane %v1423, 4
        %v1442 = vsel %vm977, %v1441, %v1440
        %v1443 = vrot.slane %v1424, 3
        %v1444 = vsel %vm980, %v1443, %v1442
        %v1445 = vrot.slane %v1425, 2
        %v1446 = vsel %vm983, %v1445, %v1444
        %v1447 = vrot.slane %v1426, 1
        %v1448 = vsel %vm986, %v1447, %v1446
        %v1450 = vadd.f32 %v1418, %v1448
        %v1451 = vld [vmem:[%s541 + $0x3] sm:$0x1]
        %v1452 = vld [vmem:[%s541 + $0x7] sm:$0x1]
        %v1453 = vld [vmem:[%s541 + $0xb] sm:$0x1]
        %v1454 = vld [vmem:[%s541 + $0xf] sm:$0x1]
        %v1455 = vld [vmem:[%s541 + $0x13] sm:$0x1]
        %v1456 = vld [vmem:[%s541 + $0x17] sm:$0x1]
        %v1457 = vld [vmem:[%s541 + $0x1b] sm:$0x1]
        %v1458 = vld [vmem:[%s541 + $0x1f] sm:$0x1]
        %v1459 = vsub.f32 %v1451, %v556
        %v1460 = vsub.f32 %v1452, %v768
        %v1461 = vsub.f32 %v1453, %v769
        %v1462 = vsub.f32 %v1454, %v770
        %v1463 = vsub.f32 %v1455, %v771
        %v1464 = vsub.f32 %v1456, %v772
        %v1465 = vsub.f32 %v1457, %v773
        %v1466 = vsub.f32 %v1458, %v774
        %v1467 = vmul.f32 %v1459, %v558
        %v1468 = vmul.f32 %v1460, %v792
        %v1469 = vmul.f32 %v1461, %v793
        %v1470 = vmul.f32 %v1462, %v794
        %v1471 = vmul.f32 %v1463, %v795
        %v1472 = vmul.f32 %v1464, %v796
        %v1473 = vmul.f32 %v1465, %v797
        %v1474 = vmul.f32 %v1466, %v798
        %v1475 = vld [vmem:[%s452 + $0x3] sm:$0x1]
        %v1476 = vld [vmem:[%s452 + $0x7] sm:$0x1]
        %v1477 = vld [vmem:[%s452 + $0xb] sm:$0x1]
        %v1478 = vld [vmem:[%s452 + $0xf] sm:$0x1]
        %v1479 = vld [vmem:[%s452 + $0x13] sm:$0x1]
        %v1480 = vld [vmem:[%s452 + $0x17] sm:$0x1]
        %v1481 = vld [vmem:[%s452 + $0x1b] sm:$0x1]
        %v1482 = vld [vmem:[%s452 + $0x1f] sm:$0x1]
        %v1483 = vsub.f32 %v1475, %v557
        %v1484 = vsub.f32 %v1476, %v824
        %v1485 = vsub.f32 %v1477, %v825
        %v1486 = vsub.f32 %v1478, %v826
        %v1487 = vsub.f32 %v1479, %v827
        %v1488 = vsub.f32 %v1480, %v828
        %v1489 = vsub.f32 %v1481, %v829
        %v1490 = vsub.f32 %v1482, %v830
        %v1491 = vmul.f32 %v1483, %v558
        %v1492 = vmul.f32 %v1484, %v792
        %v1493 = vmul.f32 %v1485, %v793
        %v1494 = vmul.f32 %v1486, %v794
        %v1495 = vmul.f32 %v1487, %v795
        %v1496 = vmul.f32 %v1488, %v796
        %v1497 = vmul.f32 %v1489, %v797
        %v1498 = vmul.f32 %v1490, %v798
        %v1499 = vld [vmem:[%s461 + $0x3] sm:$0x1]
        %v1500 = vld [vmem:[%s461 + $0x7] sm:$0x1]
        %v1501 = vld [vmem:[%s461 + $0xb] sm:$0x1]
        %v1502 = vld [vmem:[%s461 + $0xf] sm:$0x1]
        %v1503 = vld [vmem:[%s461 + $0x13] sm:$0x1]
        %v1504 = vld [vmem:[%s461 + $0x17] sm:$0x1]
        %v1505 = vld [vmem:[%s461 + $0x1b] sm:$0x1]
        %v1506 = vld [vmem:[%s461 + $0x1f] sm:$0x1]
        %v1507 = vld [vmem:[%s470 + $0x3] sm:$0x1]
        %v1508 = vld [vmem:[%s470 + $0x7] sm:$0x1]
        %v1509 = vld [vmem:[%s470 + $0xb] sm:$0x1]
        %v1510 = vld [vmem:[%s470 + $0xf] sm:$0x1]
        %v1511 = vld [vmem:[%s470 + $0x13] sm:$0x1]
        %v1512 = vld [vmem:[%s470 + $0x17] sm:$0x1]
        %v1513 = vld [vmem:[%s470 + $0x1b] sm:$0x1]
        %v1514 = vld [vmem:[%s470 + $0x1f] sm:$0x1]
        %v1515 = vmul.f32 %v1499, %v1507
        %v1516 = vmul.f32 %v1500, %v1508
        %v1517 = vmul.f32 %v1501, %v1509
        %v1518 = vmul.f32 %v1502, %v1510
        %v1519 = vmul.f32 %v1503, %v1511
        %v1520 = vmul.f32 %v1504, %v1512
        %v1521 = vmul.f32 %v1505, %v1513
        %v1522 = vmul.f32 %v1506, %v1514
        %v1523 = vmul.f32 %v1467, %v1467
        %v1524 = vmul.f32 %v1468, %v1468
        %v1525 = vmul.f32 %v1469, %v1469
        %v1526 = vmul.f32 %v1470, %v1470
        %v1527 = vmul.f32 %v1471, %v1471
        %v1528 = vmul.f32 %v1472, %v1472
        %v1529 = vmul.f32 %v1473, %v1473
        %v1530 = vmul.f32 %v1474, %v1474
        %v1531 = vmul.f32 %v1523, %v1507
        %v1532 = vmul.f32 %v1524, %v1508
        %v1533 = vmul.f32 %v1525, %v1509
        %v1534 = vmul.f32 %v1526, %v1510
        %v1535 = vmul.f32 %v1527, %v1511
        %v1536 = vmul.f32 %v1528, %v1512
        %v1537 = vmul.f32 %v1529, %v1513
        %v1538 = vmul.f32 %v1530, %v1514
        %v1539 = vmul.f32 %v1491, %v1491
        %v1540 = vmul.f32 %v1492, %v1492
        %v1541 = vmul.f32 %v1493, %v1493
        %v1542 = vmul.f32 %v1494, %v1494
        %v1543 = vmul.f32 %v1495, %v1495
        %v1544 = vmul.f32 %v1496, %v1496
        %v1545 = vmul.f32 %v1497, %v1497
        %v1546 = vmul.f32 %v1498, %v1498
        %v1547 = vmul.f32 %v1539, %v1499
        %v1548 = vmul.f32 %v1540, %v1500
        %v1549 = vmul.f32 %v1541, %v1501
        %v1550 = vmul.f32 %v1542, %v1502
        %v1551 = vmul.f32 %v1543, %v1503
        %v1552 = vmul.f32 %v1544, %v1504
        %v1553 = vmul.f32 %v1545, %v1505
        %v1554 = vmul.f32 %v1546, %v1506
        %v1555 = vadd.f32 %v1531, %v1547
        %v1556 = vadd.f32 %v1532, %v1548
        %v1557 = vadd.f32 %v1533, %v1549
        %v1558 = vadd.f32 %v1534, %v1550
        %v1559 = vadd.f32 %v1535, %v1551
        %v1560 = vadd.f32 %v1536, %v1552
        %v1561 = vadd.f32 %v1537, %v1553
        %v1562 = vadd.f32 %v1538, %v1554
        %v1563 = vrcp.pop %v1515
        %v1564 = vmul.f32 %v1555, %v1563
        %v1565 = vrcp.pop %v1516
        %v1566 = vmul.f32 %v1556, %v1565
        %v1567 = vrcp.pop %v1517
        %v1568 = vmul.f32 %v1557, %v1567
        %v1569 = vrcp.pop %v1518
        %v1570 = vmul.f32 %v1558, %v1569
        %v1571 = vrcp.pop %v1519
        %v1572 = vmul.f32 %v1559, %v1571
        %v1573 = vrcp.pop %v1520
        %v1574 = vmul.f32 %v1560, %v1573
        %v1575 = vrcp.pop %v1521
        %v1576 = vmul.f32 %v1561, %v1575
        %v1577 = vrcp.pop %v1522
        %v1578 = vmul.f32 %v1562, %v1577
        %v1579 = vlog2.pop %v1515
        %v1580 = vmul.f32 %v1579, 0.6931472
        %v1581 = vlog2.pop %v1516
        %v1582 = vmul.f32 %v1581, 0.6931472
        %v1583 = vlog2.pop %v1517
        %v1584 = vmul.f32 %v1583, 0.6931472
        %v1585 = vlog2.pop %v1518
        %v1586 = vmul.f32 %v1585, 0.6931472
        %v1587 = vlog2.pop %v1519
        %v1588 = vmul.f32 %v1587, 0.6931472
        %v1589 = vlog2.pop %v1520
        %v1590 = vmul.f32 %v1589, 0.6931472
        %v1591 = vlog2.pop %v1521
        %v1592 = vmul.f32 %v1591, 0.6931472
        %v1593 = vlog2.pop %v1522
        %v1594 = vmul.f32 %v1593, 0.6931472
        %v1595 = vadd.f32 %v1580, %v1564
        %v1596 = vadd.f32 %v1582, %v1566
        %v1597 = vadd.f32 %v1584, %v1568
        %v1598 = vadd.f32 %v1586, %v1570
        %v1599 = vadd.f32 %v1588, %v1572
        %v1600 = vadd.f32 %v1590, %v1574
        %v1601 = vadd.f32 %v1592, %v1576
        %v1602 = vadd.f32 %v1594, %v1578
        %v1611 = vrot.slane %v1596, 7
        %v1612 = vsel %vm968, %v1611, %v1595
        %v1613 = vrot.slane %v1597, 6
        %v1614 = vsel %vm971, %v1613, %v1612
        %v1615 = vrot.slane %v1598, 5
        %v1616 = vsel %vm974, %v1615, %v1614
        %v1617 = vrot.slane %v1599, 4
        %v1618 = vsel %vm977, %v1617, %v1616
        %v1619 = vrot.slane %v1600, 3
        %v1620 = vsel %vm980, %v1619, %v1618
        %v1621 = vrot.slane %v1601, 2
        %v1622 = vsel %vm983, %v1621, %v1620
        %v1623 = vrot.slane %v1602, 1
        %v1624 = vsel %vm986, %v1623, %v1622
        %v1626 = vsel %vm989, %v1624, 0.0
        %1627 = vadd.xlane.f32.xlu0 %v1626
        %v1628 = vpop.xlane.xlu0 %1627
        %v1629 = vadd.f32 %v1628, 29.406033
        %v1630 = vmul.f32 %v1629, -0.5
        %v1631 = vsub.f32 %v583, %v751
        %v1632 = vsub.f32 %v584, %v752
        %v1633 = vsub.f32 %v585, %v753
        %v1634 = vsub.f32 %v586, %v754
        %v1635 = vsub.f32 %v587, %v755
        %v1636 = vsub.f32 %v588, %v756
        %v1637 = vsub.f32 %v589, %v757
        %v1638 = vsub.f32 %v590, %v758
        %v1647 = vrot.slane %v1632, 7
        %v1648 = vsel %vm968, %v1647, %v1631
        %v1649 = vrot.slane %v1633, 6
        %v1650 = vsel %vm971, %v1649, %v1648
        %v1651 = vrot.slane %v1634, 5
        %v1652 = vsel %vm974, %v1651, %v1650
        %v1653 = vrot.slane %v1635, 4
        %v1654 = vsel %vm977, %v1653, %v1652
        %v1655 = vrot.slane %v1636, 3
        %v1656 = vsel %vm980, %v1655, %v1654
        %v1657 = vrot.slane %v1637, 2
        %v1658 = vsel %vm983, %v1657, %v1656
        %v1659 = vrot.slane %v1638, 1
        %v1660 = vsel %vm986, %v1659, %v1658
        %v1662 = vadd.f32 %v1630, %v1660
        %v1663 = vmax.f32 %v1026, %v1238
        %v1664 = vmax.f32 %v1663, %v1450
        %v1665 = vmax.f32 %v1664, %v1662
        %v1666 = vsub.f32 %v1026, %v1665
        %v1667 = vmul.f32 %v1666, 1.442695
        %v1668 = vpow.pop %v1667
        %v1669 = vsub.f32 %v1238, %v1665
        %v1670 = vmul.f32 %v1669, 1.442695
        %v1671 = vpow.pop %v1670
        %v1672 = vadd.f32 %v1668, %v1671
        %v1673 = vsub.f32 %v1450, %v1665
        %v1674 = vmul.f32 %v1673, 1.442695
        %v1675 = vpow.pop %v1674
        %v1676 = vadd.f32 %v1672, %v1675
        %v1677 = vsub.f32 %v1662, %v1665
        %v1678 = vmul.f32 %v1677, 1.442695
        %v1679 = vpow.pop %v1678
        %v1680 = vadd.f32 %v1676, %v1679
        %v1681 = vlog2.pop %v1680
        %v1682 = vmul.f32 %v1681, 0.6931472
        %v1683 = vadd.f32 %v1665, %v1682
        %vm1684 = vcmask 7168
        %1685 = vst.msk [vmem:[%s555] sm:$0xff] %vm1684, %v1683
        %p1686 = scmp.lt.s32.totalorder %s31, 1
        %s1687 = scalar_select %p1686, %s31, 1
        %s1688 = smul.addr %s1687, 8
        %s1689 = scalar_lea.vmem %s8, %s1688
        // Predicated region
        $region77: #{tpu_custom_call.1} parent=51 // pred_check
          %p1690 = pneg %p257
        $region78: #{tpu_custom_call.1} parent=51 // pred_check_branch
          %1692 = sbr.rel (%p1690) target = $region80
        $region79: #{tpu_custom_call.1} parent=51 // pred_region
          _
        $region80: #{tpu_custom_call.1} parent=51 // pred_fallthru
          _
      $region52: #{tpu_custom_call.1} parent=5 // pred_fallthru
        _
      %p1693 = scmp.le.s32.totalorder 2, %s26
      // Predicated region
      $region81: #{tpu_custom_call.1} parent=5 // pred_check
        %p1694 = pneg %p1693
      $region82: #{tpu_custom_call.1} parent=5 // pred_check_branch
        %1696 = sbr.rel (%p1694) target = $region84
      $region83: #{tpu_custom_call.1} parent=5 // pred_region
        %s1697 = ssub.s32 %s26, 2
        // Predicated region
        $region85: #{tpu_custom_call.1} parent=83 // pred_check
          %p1698 = pneg %p263
        $region86: #{tpu_custom_call.1} parent=83 // pred_check_branch
          %1700 = sbr.rel (%p1698) target = $region88
        $region87: #{tpu_custom_call.1} parent=83 // pred_region
          %p1701 = scmp.lt.s32.totalorder %s32, 1
          %s1702 = scalar_select %p1701, %s32, 1
          %s1703 = smul.addr %s1702, 8
          %s1704 = scalar_lea.vmem %s8, %s1703
        $region88: #{tpu_custom_call.1} parent=83 // pred_fallthru
          _
      $region84: #{tpu_custom_call.1} parent=5 // pred_fallthru
        _
    $region6: #{tpu_custom_call.1} parent=1 // loop_footer
      %s30 = sadd.s32 1, %s26
    $region7: #{tpu_custom_call.1} parent=1 // loop_footer_branch
      %25 = sbr.rel target = $region3
    $region8: #{tpu_custom_call.1} parent=1 // loop_exit
      _
    %1705 = vsyncpa [#allocation3], 1
    %s1706 = scalar_lea.sflag [#allocation3], 1
    %1707 = vsyncpa %s1706, 1
    %1708 = vsyncpa [#allocation5], 1
    %s1709 = scalar_lea.sflag [#allocation5], 1
    %1710 = vsyncpa %s1709, 1
    %1711 = vsyncpa [#allocation8], 1
    %s1712 = scalar_lea.sflag [#allocation8], 1
    %1713 = vsyncpa %s1712, 1
    %1714 = vsyncpa [#allocation11], 1
    %s1715 = scalar_lea.sflag [#allocation11], 1
    %1716 = vsyncpa %s1715, 1

</llo_original>
